<compile_context>
chip_gen: v6e
topology: v6e:2x2x1
jax: 0.10.0
libtpu: 0.0.40
codegen_flags: <defaults>
</compile_context>

<pallas_src>
import jax
import jax.numpy as jnp
from jax.experimental import pallas as pl
from jax.experimental.pallas import tpu as pltpu


# ---------------------------------------------------------------------------
# Kernels
# ---------------------------------------------------------------------------
def pool_kernel(x_ref, o_ref):
    # x_ref: (bp, C, H*W) -- reduce over the lane axis (XLU), accumulate in f32,
    # emit bf16 so the MLP kernel never re-casts its input.
    o_ref[...] = jnp.mean(x_ref[...].astype(jnp.float32), axis=-1).astype(o_ref.dtype)


def fused_mlp_kernel(x_ref, w1_ref, b1_ref, w2_ref, b2_ref, w3_ref, b3_ref,
                     o_ref, h2_acc_ref):
    # Grid axis 0 streams matching (D0, tn1) column tiles of W1 and (tn1, D2)
    # row tiles of W2.  h2_acc_ref: persistent (B, D2) f32 accumulator.
    j = pl.program_id(0)

    @pl.when(j == 0)
    def _():
        h2_acc_ref[...] = jnp.zeros_like(h2_acc_ref)

    # ---- layer 1 tile: x (bf16) @ W1[:, tile_j] -> f32, bias + ReLU in f32 ---
    h_tile = jnp.dot(x_ref[...], w1_ref[...], preferred_element_type=jnp.float32)
    h_tile = jnp.maximum(h_tile + b1_ref[...], 0.0)
    # Dropout(p=0.5) is the identity in eval mode.

    # ---- layer 2 partial: relu(h_tile) @ W2[tile_j, :] accumulated ----------
    h2_acc_ref[...] += jnp.dot(h_tile.astype(jnp.bfloat16), w2_ref[...],
                               preferred_element_type=jnp.float32)

    # ---- epilogue: bias2 / ReLU / layer 3, once after the last tile ---------
    @pl.when(j == pl.num_programs(0) - 1)
    def _():
        h2 = jnp.maximum(h2_acc_ref[...] + b2_ref[...], 0.0)
        out = jnp.dot(h2.astype(jnp.bfloat16), w3_ref[...],
                      preferred_element_type=jnp.float32) + b3_ref[...]
        o_ref[...] = out.astype(o_ref.dtype)


# ---------------------------------------------------------------------------
# VMEM sizing helpers
# ---------------------------------------------------------------------------
def _vmem_capacity_bytes():
    try:
        return int(pltpu.get_tpu_info().vmem_capacity_bytes)
    except Exception:
        return 128 << 20          # conservative fallback (v5e/v6e physical)


def _vmem_cap():
    return int(0.75 * _vmem_capacity_bytes())   # ~96 MiB v5e/v6e, ~48 MiB v7x


def _mlp_vmem_limit_bytes(B, D0, D1, D2, nc, tn1):
    # streamed (double-buffered): W1 tile (bf16), b1 tile (f32), W2 tile (bf16)
    streamed = 2 * (D0 * tn1 * 2 + tn1 * 4 + tn1 * D2 * 2)
    # resident (pipeline still double-buffers them): x, b2, W3, b3, out, h2_acc
    resident = 2 * (B * D0 * 2 + D2 * 4 + D2 * nc * 2 + nc * 4 + B * nc * 4) \
               + B * D2 * 4
    need = 2 * (streamed + resident)            # 2x headroom for (8,128) padding
    return int(min(max(need, 8 << 20), _vmem_cap()))


def _pool_vmem_limit_bytes(bp, C, HW):
    block = bp * C * HW * 4 + bp * C * 2
    need = 4 * block                            # double-buffer + headroom
    return int(min(max(need, 8 << 20), _vmem_cap()))


# ---------------------------------------------------------------------------
# Wrappers
# ---------------------------------------------------------------------------
def _choose_pool_bp(P, per_patch_bytes, target_bytes=2 << 20):
    # Grow the block toward ~2 MiB/step while keeping >= 2 parallel grid steps.
    bp = 64
    while (P % (bp * 2) == 0 and P // (bp * 2) >= 2
           and bp * per_patch_bytes < target_bytes):
        bp *= 2
    return bp


def adaptive_avg_pool_1x1(fused_feat):
    # fused_feat: (P, C, H, W) NCHW -> (P, C) global average pool, emitted bf16.
    P, C, H, W = fused_feat.shape
    x = fused_feat.reshape(P, C, H * W)          # free reshape, no transpose
    bp = _choose_pool_bp(P, C * H * W * 4)
    return pl.pallas_call(
        pool_kernel,
        grid=(P // bp,),
        in_specs=[pl.BlockSpec((bp, C, H * W), lambda i: (i, 0, 0))],
        out_specs=pl.BlockSpec((bp, C), lambda i: (i, 0)),
        out_shape=jax.ShapeDtypeStruct((P, C), jnp.bfloat16),
        compiler_params=pltpu.CompilerParams(
            dimension_semantics=("parallel",),
            vmem_limit_bytes=_pool_vmem_limit_bytes(bp, C, H * W)),
    )(x)


def _pick_tn1(D1, requested=None):
    if requested is None:
        # 512 on 128 MiB-VMEM parts (v5e/v6e), 256 on 64 MiB parts (v7x).
        requested = 512 if _vmem_capacity_bytes() >= (96 << 20) else 256
    tn1 = min(requested, D1)
    while D1 % tn1 != 0:
        tn1 //= 2
    return max(tn1, 1)


def mlp_head(x, params, *, tn1=None):
    w1, b1, w2, b2, w3, b3 = params
    B, D0 = x.shape
    D1 = w1.shape[1]
    D2 = w2.shape[1]
    nc = w3.shape[1]
    tn1 = _pick_tn1(D1, tn1)
    n_steps = D1 // tn1

    bytes_accessed = (x.size * x.dtype.itemsize
                      + sum(p.size * p.dtype.itemsize for p in params)
                      + B * nc * 4)
    cost = pl.CostEstimate(
        flops=2 * B * (D0 * D1 + D1 * D2 + D2 * nc),
        transcendentals=0,
        bytes_accessed=bytes_accessed,
    )

    grid_spec = pltpu.PrefetchScalarGridSpec(
        num_scalar_prefetch=0,
        grid=(n_steps,),
        in_specs=[
            pl.BlockSpec((B, D0), lambda j: (0, 0)),      # x (bf16): resident
            pl.BlockSpec((D0, tn1), lambda j: (0, j)),    # W1: streamed column tiles
            pl.BlockSpec((1, tn1), lambda j: (0, j)),     # b1: streamed with W1
            pl.BlockSpec((tn1, D2), lambda j: (j, 0)),    # W2: streamed row tiles
            pl.BlockSpec((1, D2), lambda j: (0, 0)),      # b2: resident
            pl.BlockSpec((D2, nc), lambda j: (0, 0)),     # W3: resident (tiny)
            pl.BlockSpec((1, nc), lambda j: (0, 0)),      # b3: resident
        ],
        out_specs=pl.BlockSpec((B, nc), lambda j: (0, 0)),
        scratch_shapes=[pltpu.VMEM((B, D2), jnp.float32)],   # persistent h2 accum
    )
    return pl.pallas_call(
        fused_mlp_kernel,
        grid_spec=grid_spec,
        out_shape=jax.ShapeDtypeStruct((B, nc), jnp.float32),
        compiler_params=pltpu.CompilerParams(
            dimension_semantics=("arbitrary",),
            vmem_limit_bytes=_mlp_vmem_limit_bytes(B, D0, D1, D2, nc, tn1)),
        cost_estimate=cost,
    )(x, w1, b1, w2, b2, w3, b3)


def classifier_forward(fused_feat, params, channels, *, tn1=None):
    P, C, H, W = fused_feat.shape
    assert C == channels and P % 64 == 0
    pooled = adaptive_avg_pool_1x1(fused_feat)            # (P, C) bf16
    x = pooled.reshape(P // 64, channels * 64)            # .view(-1, C*64): free reshape
    return mlp_head(x, params, tn1=tn1)


# ---------------------------------------------------------------------------
# Deterministic parameter init (torch.nn.Linear default: U(-1/sqrt(in), 1/sqrt(in)))
# Weights stored bf16 (HBM traffic on this HBM-bound head), biases f32.
# TODO(synk): validate the bf16-weight choice against the true f32 torch output
#             before deploying (kernel + reference here share the bf16 weights).
# ---------------------------------------------------------------------------
def init_params(key, channels, num_classes):
    dims = [channels * 64, channels * 32, channels, num_classes]
    params = []
    for i in range(3):
        fan_in, fan_out = dims[i], dims[i + 1]
        key, kw, kb = jax.random.split(key, 3)
        bound = 1.0 / (fan_in ** 0.5)
        w = jax.random.uniform(kw, (fan_in, fan_out), jnp.float32,
                               -bound, bound).astype(jnp.bfloat16)
        b = jax.random.uniform(kb, (1, fan_out), jnp.float32, -bound, bound)
        params += [w, b]
    return tuple(params)


def reference_forward(fused_feat, params, channels):
    # Pure-JAX reference mirroring the kernel's dtype choices
    # (bf16 pooled activations + bf16 weights, f32 accumulation).
    w1, b1, w2, b2, w3, b3 = params
    pooled = jnp.mean(fused_feat.astype(jnp.float32), axis=(2, 3)).astype(jnp.bfloat16)
    x = pooled.reshape(-1, channels * 64)
    h = jnp.maximum(jnp.dot(x, w1, preferred_element_type=jnp.float32) + b1, 0.0)
    h = jnp.maximum(jnp.dot(h.astype(jnp.bfloat16), w2,
                            preferred_element_type=jnp.float32) + b2, 0.0)
    return jnp.dot(h.astype(jnp.bfloat16), w3,
                   preferred_element_type=jnp.float32) + b3


if __name__ == "__main__":
    # Small-scale but structurally faithful: channels=16 (module default is 256),
    # 64 patches per image, batch of 2 images -> P = 128 patch feature maps.
    channels = 16
    num_classes = 7
    batch = 2
    P, H, W = batch * 64, 4, 4

    key = jax.random.PRNGKey(0)
    k_x, k_p = jax.random.split(key)
    fused_feat = jax.random.normal(k_x, (P, channels, H, W), jnp.float32)
    params = init_params(k_p, channels, num_classes)

    out = classifier_forward(fused_feat, params, channels)
    out = jax.block_until_ready(out)

    ref = reference_forward(fused_feat, params, channels)
    assert out.shape == (batch, num_classes)
    assert jnp.allclose(out, ref, atol=2e-2, rtol=2e-2), (out, ref)

    print("KERNEL_OK")
</pallas_src>

<mosaic_0001>
module attributes {stable_mosaic.version = 11 : i64} {
  func.func @pool_kernel(%arg0: i32, %arg1: memref<64x16x16xf32, #tpu.memory_space<vmem>>, %arg2: memref<64x16xbf16, #tpu.memory_space<vmem>>) attributes {dimension_semantics = [#tpu.dimension_semantics<parallel>], iteration_bounds = array<i64: 2>, scalar_prefetch = 0 : i64, scratch_operands = 0 : i64, tpu.core_type = #tpu.core_type<tc>, window_params = [{transform_indices = @transform_0, window_bounds = array<i64: 64, 16, 16>}, {transform_indices = @transform_1, window_bounds = array<i64: 64, 16>}]} {
    %c0 = arith.constant 0 : index
    %c0_0 = arith.constant 0 : index
    %c0_1 = arith.constant 0 : index
    %0 = vector.load %arg1[%c0, %c0_0, %c0_1] : memref<64x16x16xf32, #tpu.memory_space<vmem>>, vector<64x16x16xf32>
    %cst = arith.constant dense<0.000000e+00> : vector<64x16xf32>
    %1 = vector.multi_reduction <add>, %0, %cst [2] : vector<64x16x16xf32> to vector<64x16xf32>
    %cst_2 = arith.constant 1.600000e+01 : f32
    %2 = vector.broadcast %cst_2 : f32 to vector<64x16xf32>
    %3 = arith.divf %1, %2 : vector<64x16xf32>
    %4 = arith.truncf %3 : vector<64x16xf32> to vector<64x16xbf16>
    %c0_3 = arith.constant 0 : index
    %c0_4 = arith.constant 0 : index
    %5 = vector.load %arg2[%c0_3, %c0_4] : memref<64x16xbf16, #tpu.memory_space<vmem>>, vector<64x16xbf16>
    tpu.vector_store %arg2[%c0_3, %c0_4], %4 {strides = array<i32>} : memref<64x16xbf16, #tpu.memory_space<vmem>>, vector<64x16xbf16>,
    return
  }
  func.func @transform_0(%arg0: i32) -> (i32, i32, i32) {
    %c0_i32 = arith.constant 0 : i32
    %c0_i32_0 = arith.constant 0 : i32
    %c0_i32_1 = arith.constant 0 : i32
    return %arg0, %c0_i32, %c0_i32_0 : i32, i32, i32
  }
  func.func @transform_1(%arg0: i32) -> (i32, i32) {
    %c0_i32 = arith.constant 0 : i32
    %c0_i32_0 = arith.constant 0 : i32
    return %arg0, %c0_i32 : i32, i32
  }
}

</mosaic_0001>

<llo_original>
// kernel: tpu_custom_call.1
$region0: #{tpu_custom_call.1}
  #allocation0 [shape = 'u32[]', space=smem, size = 0x4, offset = 0x4, fixed_abs, tag = 'smem constant byte address 0x4 - core index']
  #allocation1 [shape = 'u32[144,128]{1,0:T(1,128)}', space=vmem, size = 0x12000, scoped, tag = 'internal scratch']
  %s0 = inlined_call_operand.vmem [shape: f32[128,16,16], index: 0, kind: input, shape index: {}]
  %s1 = inlined_call_operand.vmem [shape: bf16[128,16], index: 1, kind: output, shape index: {}]
  %s2 = sld [smem:[#allocation0]]
  $region37: #{tpu_custom_call.1} parent=0
    _
  %s4 = ssub.s32 1, %s2
  %s5 = scalar_select 0, %s4, %s2
  loop: start=0, step=1, limit=4
  $region2: #{tpu_custom_call.1} parent=0 // loop_pre_header
    _
  $region3: #{tpu_custom_call.1} parent=0 // loop_header
    %s7 = sphi 0, %s11
    %p8 = scmp.ge.s32.totalorder %s7, 4
    %s17 = sphi 0, %s19
    %s20 = sphi 0, %s17
    %s21 = sphi 0, %s20
    %s37 = sphi 0, %s21
    %s43 = sphi 0, %s45
    %s46 = sphi 0, %s43
    %s47 = sphi 0, %s46
    %s63 = sphi 0, %s47
  $region4: #{tpu_custom_call.1} parent=0 // loop_header_branch
    %10 = sbr.rel (%p8) target = $region8
  $region5: #{tpu_custom_call.1} parent=0 // loop_body
    %s12 = ssub.s32 %s7, 1
    %s13 = ssub.s32 %s7, 2
    %s14 = sadd.s32 %s7, 1
    %s15 = ssub.s32 %s7, %s14
    %p16 = scmp.eq.s32.totalorder %s15, 0
    %s18 = sadd.s32 %s17, 1
    %s19 = scalar_select %p16, %s17, %s18
    %p22 = pneg %p16
    %p23 = scmp.eq.s32.totalorder %s7, 1
    %p24 = por %p22, %p23
    %p25 = scmp.ne.s32.totalorder %s17, %s20
    %p26 = scmp.eq.s32.totalorder %s7, 0
    %p27 = por %p25, %p26
    %p28 = scmp.ne.s32.totalorder %s17, %s20
    %p29 = scmp.eq.s32.totalorder %s12, 1
    %p30 = por %p28, %p29
    %p31 = scmp.ne.s32.totalorder %s20, %s21
    %p32 = scmp.eq.s32.totalorder %s12, 0
    %p33 = por %p31, %p32
    %p34 = scmp.ne.s32.totalorder %s20, %s21
    %p35 = scmp.eq.s32.totalorder %s13, 1
    %p36 = por %p34, %p35
    %p38 = scmp.ne.s32.totalorder %s21, %s37
    %p39 = scmp.eq.s32.totalorder %s13, 0
    %p40 = por %p38, %p39
    %s41 = ssub.s32 %s7, %s14
    %p42 = scmp.eq.s32.totalorder %s41, 0
    %s44 = sadd.s32 %s43, 1
    %s45 = scalar_select %p42, %s43, %s44
    %p48 = pneg %p42
    %p49 = scmp.eq.s32.totalorder %s7, 1
    %p50 = por %p48, %p49
    %p51 = scmp.ne.s32.totalorder %s43, %s46
    %p52 = scmp.eq.s32.totalorder %s7, 0
    %p53 = por %p51, %p52
    %p54 = scmp.ne.s32.totalorder %s43, %s46
    %p55 = scmp.eq.s32.totalorder %s12, 1
    %p56 = por %p54, %p55
    %p57 = scmp.ne.s32.totalorder %s46, %s47
    %p58 = scmp.eq.s32.totalorder %s12, 0
    %p59 = por %p57, %p58
    %p60 = scmp.ne.s32.totalorder %s46, %s47
    %p61 = scmp.eq.s32.totalorder %s13, 1
    %p62 = por %p60, %p61
    %p64 = scmp.ne.s32.totalorder %s47, %s63
    %p65 = scmp.eq.s32.totalorder %s13, 0
    %p66 = por %p64, %p65
    %p67 = scmp.le.s32.totalorder 1, %s7
    %p68 = scmp.lt.s32.totalorder %s7, 3
    %p69 = pnand %p67, %p68
    %p70 = pneg %p69
    // Predicated region
    $region9: #{tpu_custom_call.1} parent=5 // pred_check
      _
    $region10: #{tpu_custom_call.1} parent=5 // pred_check_branch
      %72 = sbr.rel (%p69) target = $region12
    $region11: #{tpu_custom_call.1} parent=5 // pred_region
      %s73 = ssub.s32 %s7, 1
    $region12: #{tpu_custom_call.1} parent=5 // pred_fallthru
      _
    %p74 = scmp.lt.s32.totalorder %s7, 2
    // Predicated region
    $region13: #{tpu_custom_call.1} parent=5 // pred_check
      %p75 = pneg %p74
    $region14: #{tpu_custom_call.1} parent=5 // pred_check_branch
      %77 = sbr.rel (%p75) target = $region16
    $region15: #{tpu_custom_call.1} parent=5 // pred_region
      // Predicated region
      $region17: #{tpu_custom_call.1} parent=15 // pred_check
        %p78 = pneg %p27
      $region18: #{tpu_custom_call.1} parent=15 // pred_check_branch
        %80 = sbr.rel (%p78) target = $region20
      $region19: #{tpu_custom_call.1} parent=15 // pred_region
        %s81 = smul.u32 64, %s7
        %p82 = scmp.lt.s32.totalorder %s81, 127
        %s83 = scalar_select %p82, %s81, 127
        %s84 = smul.addr %s83, 2
        %s85 = smul.addr %s84, 8
        %s86 = scalar_lea.vmem %s0, %s85
        %s87 = smul.u32 64, %s7
      $region20: #{tpu_custom_call.1} parent=15 // pred_fallthru
        _
    $region16: #{tpu_custom_call.1} parent=5 // pred_fallthru
      _
    %p88 = scmp.le.s32.totalorder 1, %s7
    %p89 = scmp.lt.s32.totalorder %s7, 3
    %p90 = pnand %p88, %p89
    %p91 = pneg %p90
    // Predicated region
    $region21: #{tpu_custom_call.1} parent=5 // pred_check
      _
    $region22: #{tpu_custom_call.1} parent=5 // pred_check_branch
      %93 = sbr.rel (%p90) target = $region24
    $region23: #{tpu_custom_call.1} parent=5 // pred_region
      %s94 = ssub.s32 %s7, 1
      %s95 = smul.u32 64, %s12
      %p96 = scmp.lt.s32.totalorder %s95, 127
      %s97 = scalar_select %p96, %s95, 127
      %s98 = smul.addr %s97, 2
      %s99 = smul.addr %s98, 8
      %s100 = scalar_lea.vmem %s0, %s99
      %p101 = pneg %p33
      %p102 = pneg %p30
      %p103 = pneg %p59
      %p104 = pneg %p56
      %s105 = smul.u32 8, %s12
      %p106 = scmp.lt.s32.totalorder %s105, 15
      %s107 = scalar_select %p106, %s105, 15
      %s108 = smul.addr %s107, 4
      %s109 = scalar_lea.vmem %s1, %s108
      %s110 = smul.u32 64, %s12
      %p111 = scmp.lt.s32.totalorder %s110, 127
      %s112 = scalar_select %p111, %s110, 127
      %s113 = smul.addr %s112, 2
      %s114 = smul.addr %s113, 8
      %s115 = scalar_lea.vmem %s0, %s114
      %s116 = smul.u32 64, %s12
      %s117 = smul.u32 8, %s12
      %p118 = scmp.lt.s32.totalorder %s117, 15
      %s119 = scalar_select %p118, %s117, 15
      %s120 = smul.addr %s119, 4
      %s121 = scalar_lea.vmem %s1, %s120
      %s122 = smul.u32 8, %s12
      %v123 = vld [vmem:[%s115] sm:$0xff]
      %v124 = vld [vmem:[%s115 + $0x8] sm:$0xff]
      %v125 = vld [vmem:[%s115 + $0x10] sm:$0xff]
      %v126 = vld [vmem:[%s115 + $0x18] sm:$0xff]
      %v127 = vld [vmem:[%s115 + $0x20] sm:$0xff]
      %v128 = vld [vmem:[%s115 + $0x28] sm:$0xff]
      %v129 = vld [vmem:[%s115 + $0x30] sm:$0xff]
      %v130 = vld [vmem:[%s115 + $0x38] sm:$0xff]
      %v131 = vld [vmem:[%s115 + $0x40] sm:$0xff]
      %v132 = vld [vmem:[%s115 + $0x48] sm:$0xff]
      %v133 = vld [vmem:[%s115 + $0x50] sm:$0xff]
      %v134 = vld [vmem:[%s115 + $0x58] sm:$0xff]
      %v135 = vld [vmem:[%s115 + $0x60] sm:$0xff]
      %v136 = vld [vmem:[%s115 + $0x68] sm:$0xff]
      %v137 = vld [vmem:[%s115 + $0x70] sm:$0xff]
      %v138 = vld [vmem:[%s115 + $0x78] sm:$0xff]
      %v139 = vld [vmem:[%s115 + $0x80] sm:$0xff]
      %v140 = vld [vmem:[%s115 + $0x88] sm:$0xff]
      %v141 = vld [vmem:[%s115 + $0x90] sm:$0xff]
      %v142 = vld [vmem:[%s115 + $0x98] sm:$0xff]
      %v143 = vld [vmem:[%s115 + $0xa0] sm:$0xff]
      %v144 = vld [vmem:[%s115 + $0xa8] sm:$0xff]
      %v145 = vld [vmem:[%s115 + $0xb0] sm:$0xff]
      %v146 = vld [vmem:[%s115 + $0xb8] sm:$0xff]
      %v147 = vld [vmem:[%s115 + $0xc0] sm:$0xff]
      %v148 = vld [vmem:[%s115 + $0xc8] sm:$0xff]
      %v149 = vld [vmem:[%s115 + $0xd0] sm:$0xff]
      %v150 = vld [vmem:[%s115 + $0xd8] sm:$0xff]
      %v151 = vld [vmem:[%s115 + $0xe0] sm:$0xff]
      %v152 = vld [vmem:[%s115 + $0xe8] sm:$0xff]
      %v153 = vld [vmem:[%s115 + $0xf0] sm:$0xff]
      %v154 = vld [vmem:[%s115 + $0xf8] sm:$0xff]
      %v155 = vld [vmem:[%s115 + $0x100] sm:$0xff]
      %v156 = vld [vmem:[%s115 + $0x108] sm:$0xff]
      %v157 = vld [vmem:[%s115 + $0x110] sm:$0xff]
      %v158 = vld [vmem:[%s115 + $0x118] sm:$0xff]
      %v159 = vld [vmem:[%s115 + $0x120] sm:$0xff]
      %v160 = vld [vmem:[%s115 + $0x128] sm:$0xff]
      %v161 = vld [vmem:[%s115 + $0x130] sm:$0xff]
      %v162 = vld [vmem:[%s115 + $0x138] sm:$0xff]
      %v163 = vld [vmem:[%s115 + $0x140] sm:$0xff]
      %v164 = vld [vmem:[%s115 + $0x148] sm:$0xff]
      %v165 = vld [vmem:[%s115 + $0x150] sm:$0xff]
      %v166 = vld [vmem:[%s115 + $0x158] sm:$0xff]
      %v167 = vld [vmem:[%s115 + $0x160] sm:$0xff]
      %v168 = vld [vmem:[%s115 + $0x168] sm:$0xff]
      %v169 = vld [vmem:[%s115 + $0x170] sm:$0xff]
      %v170 = vld [vmem:[%s115 + $0x178] sm:$0xff]
      %v171 = vld [vmem:[%s115 + $0x180] sm:$0xff]
      %v172 = vld [vmem:[%s115 + $0x188] sm:$0xff]
      %v173 = vld [vmem:[%s115 + $0x190] sm:$0xff]
      %v174 = vld [vmem:[%s115 + $0x198] sm:$0xff]
      %v175 = vld [vmem:[%s115 + $0x1a0] sm:$0xff]
      %v176 = vld [vmem:[%s115 + $0x1a8] sm:$0xff]
      %v177 = vld [vmem:[%s115 + $0x1b0] sm:$0xff]
      %v178 = vld [vmem:[%s115 + $0x1b8] sm:$0xff]
      %v179 = vld [vmem:[%s115 + $0x1c0] sm:$0xff]
      %v180 = vld [vmem:[%s115 + $0x1c8] sm:$0xff]
      %v181 = vld [vmem:[%s115 + $0x1d0] sm:$0xff]
      %v182 = vld [vmem:[%s115 + $0x1d8] sm:$0xff]
      %v183 = vld [vmem:[%s115 + $0x1e0] sm:$0xff]
      %v184 = vld [vmem:[%s115 + $0x1e8] sm:$0xff]
      %v185 = vld [vmem:[%s115 + $0x1f0] sm:$0xff]
      %v186 = vld [vmem:[%s115 + $0x1f8] sm:$0xff]
      %v187 = vld [vmem:[%s115 + $0x200] sm:$0xff]
      %v188 = vld [vmem:[%s115 + $0x208] sm:$0xff]
      %v189 = vld [vmem:[%s115 + $0x210] sm:$0xff]
      %v190 = vld [vmem:[%s115 + $0x218] sm:$0xff]
      %v191 = vld [vmem:[%s115 + $0x220] sm:$0xff]
      %v192 = vld [vmem:[%s115 + $0x228] sm:$0xff]
      %v193 = vld [vmem:[%s115 + $0x230] sm:$0xff]
      %v194 = vld [vmem:[%s115 + $0x238] sm:$0xff]
      %v195 = vld [vmem:[%s115 + $0x240] sm:$0xff]
      %v196 = vld [vmem:[%s115 + $0x248] sm:$0xff]
      %v197 = vld [vmem:[%s115 + $0x250] sm:$0xff]
      %v198 = vld [vmem:[%s115 + $0x258] sm:$0xff]
      %v199 = vld [vmem:[%s115 + $0x260] sm:$0xff]
      %v200 = vld [vmem:[%s115 + $0x268] sm:$0xff]
      %v201 = vld [vmem:[%s115 + $0x270] sm:$0xff]
      %v202 = vld [vmem:[%s115 + $0x278] sm:$0xff]
      %v203 = vld [vmem:[%s115 + $0x280] sm:$0xff]
      %v204 = vld [vmem:[%s115 + $0x288] sm:$0xff]
      %v205 = vld [vmem:[%s115 + $0x290] sm:$0xff]
      %v206 = vld [vmem:[%s115 + $0x298] sm:$0xff]
      %v207 = vld [vmem:[%s115 + $0x2a0] sm:$0xff]
      %v208 = vld [vmem:[%s115 + $0x2a8] sm:$0xff]
      %v209 = vld [vmem:[%s115 + $0x2b0] sm:$0xff]
      %v210 = vld [vmem:[%s115 + $0x2b8] sm:$0xff]
      %v211 = vld [vmem:[%s115 + $0x2c0] sm:$0xff]
      %v212 = vld [vmem:[%s115 + $0x2c8] sm:$0xff]
      %v213 = vld [vmem:[%s115 + $0x2d0] sm:$0xff]
      %v214 = vld [vmem:[%s115 + $0x2d8] sm:$0xff]
      %v215 = vld [vmem:[%s115 + $0x2e0] sm:$0xff]
      %v216 = vld [vmem:[%s115 + $0x2e8] sm:$0xff]
      %v217 = vld [vmem:[%s115 + $0x2f0] sm:$0xff]
      %v218 = vld [vmem:[%s115 + $0x2f8] sm:$0xff]
      %v219 = vld [vmem:[%s115 + $0x300] sm:$0xff]
      %v220 = vld [vmem:[%s115 + $0x308] sm:$0xff]
      %v221 = vld [vmem:[%s115 + $0x310] sm:$0xff]
      %v222 = vld [vmem:[%s115 + $0x318] sm:$0xff]
      %v223 = vld [vmem:[%s115 + $0x320] sm:$0xff]
      %v224 = vld [vmem:[%s115 + $0x328] sm:$0xff]
      %v225 = vld [vmem:[%s115 + $0x330] sm:$0xff]
      %v226 = vld [vmem:[%s115 + $0x338] sm:$0xff]
      %v227 = vld [vmem:[%s115 + $0x340] sm:$0xff]
      %v228 = vld [vmem:[%s115 + $0x348] sm:$0xff]
      %v229 = vld [vmem:[%s115 + $0x350] sm:$0xff]
      %v230 = vld [vmem:[%s115 + $0x358] sm:$0xff]
      %v231 = vld [vmem:[%s115 + $0x360] sm:$0xff]
      %v232 = vld [vmem:[%s115 + $0x368] sm:$0xff]
      %v233 = vld [vmem:[%s115 + $0x370] sm:$0xff]
      %v234 = vld [vmem:[%s115 + $0x378] sm:$0xff]
      %v235 = vld [vmem:[%s115 + $0x380] sm:$0xff]
      %v236 = vld [vmem:[%s115 + $0x388] sm:$0xff]
      %v237 = vld [vmem:[%s115 + $0x390] sm:$0xff]
      %v238 = vld [vmem:[%s115 + $0x398] sm:$0xff]
      %v239 = vld [vmem:[%s115 + $0x3a0] sm:$0xff]
      %v240 = vld [vmem:[%s115 + $0x3a8] sm:$0xff]
      %v241 = vld [vmem:[%s115 + $0x3b0] sm:$0xff]
      %v242 = vld [vmem:[%s115 + $0x3b8] sm:$0xff]
      %v243 = vld [vmem:[%s115 + $0x3c0] sm:$0xff]
      %v244 = vld [vmem:[%s115 + $0x3c8] sm:$0xff]
      %v245 = vld [vmem:[%s115 + $0x3d0] sm:$0xff]
      %v246 = vld [vmem:[%s115 + $0x3d8] sm:$0xff]
      %v247 = vld [vmem:[%s115 + $0x3e0] sm:$0xff]
      %v248 = vld [vmem:[%s115 + $0x3e8] sm:$0xff]
      %v249 = vld [vmem:[%s115 + $0x3f0] sm:$0xff]
      %v250 = vld [vmem:[%s115 + $0x3f8] sm:$0xff]
      %vm251 = vcmask 130048
      %v252 = vsel %vm251, %v123, 0.0
      %253 = vadd.xlane.f32.xlu0 %v252
      %v254 = vpop.xlane.xlu0 %253
      %v255 = vsel %vm251, %v124, 0.0
      %256 = vadd.xlane.f32.xlu0 %v255
      %v257 = vpop.xlane.xlu0 %256
      %v258 = vsel %vm251, %v125, 0.0
      %259 = vadd.xlane.f32.xlu0 %v258
      %v260 = vpop.xlane.xlu0 %259
      %v261 = vsel %vm251, %v126, 0.0
      %262 = vadd.xlane.f32.xlu0 %v261
      %v263 = vpop.xlane.xlu0 %262
      %v264 = vsel %vm251, %v127, 0.0
      %265 = vadd.xlane.f32.xlu0 %v264
      %v266 = vpop.xlane.xlu0 %265
      %v267 = vsel %vm251, %v128, 0.0
      %268 = vadd.xlane.f32.xlu0 %v267
      %v269 = vpop.xlane.xlu0 %268
      %v270 = vsel %vm251, %v129, 0.0
      %271 = vadd.xlane.f32.xlu0 %v270
      %v272 = vpop.xlane.xlu0 %271
      %v273 = vsel %vm251, %v130, 0.0
      %274 = vadd.xlane.f32.xlu0 %v273
      %v275 = vpop.xlane.xlu0 %274
      %v276 = vsel %vm251, %v131, 0.0
      %277 = vadd.xlane.f32.xlu0 %v276
      %v278 = vpop.xlane.xlu0 %277
      %v279 = vsel %vm251, %v132, 0.0
      %280 = vadd.xlane.f32.xlu0 %v279
      %v281 = vpop.xlane.xlu0 %280
      %v282 = vsel %vm251, %v133, 0.0
      %283 = vadd.xlane.f32.xlu0 %v282
      %v284 = vpop.xlane.xlu0 %283
      %v285 = vsel %vm251, %v134, 0.0
      %286 = vadd.xlane.f32.xlu0 %v285
      %v287 = vpop.xlane.xlu0 %286
      %v288 = vsel %vm251, %v135, 0.0
      %289 = vadd.xlane.f32.xlu0 %v288
      %v290 = vpop.xlane.xlu0 %289
      %v291 = vsel %vm251, %v136, 0.0
      %292 = vadd.xlane.f32.xlu0 %v291
      %v293 = vpop.xlane.xlu0 %292
      %v294 = vsel %vm251, %v137, 0.0
      %295 = vadd.xlane.f32.xlu0 %v294
      %v296 = vpop.xlane.xlu0 %295
      %v297 = vsel %vm251, %v138, 0.0
      %298 = vadd.xlane.f32.xlu0 %v297
      %v299 = vpop.xlane.xlu0 %298
      %v300 = vsel %vm251, %v139, 0.0
      %301 = vadd.xlane.f32.xlu0 %v300
      %v302 = vpop.xlane.xlu0 %301
      %v303 = vsel %vm251, %v140, 0.0
      %304 = vadd.xlane.f32.xlu0 %v303
      %v305 = vpop.xlane.xlu0 %304
      %v306 = vsel %vm251, %v141, 0.0
      %307 = vadd.xlane.f32.xlu0 %v306
      %v308 = vpop.xlane.xlu0 %307
      %v309 = vsel %vm251, %v142, 0.0
      %310 = vadd.xlane.f32.xlu0 %v309
      %v311 = vpop.xlane.xlu0 %310
      %v312 = vsel %vm251, %v143, 0.0
      %313 = vadd.xlane.f32.xlu0 %v312
      %v314 = vpop.xlane.xlu0 %313
      %v315 = vsel %vm251, %v144, 0.0
      %316 = vadd.xlane.f32.xlu0 %v315
      %v317 = vpop.xlane.xlu0 %316
      %v318 = vsel %vm251, %v145, 0.0
      %319 = vadd.xlane.f32.xlu0 %v318
      %v320 = vpop.xlane.xlu0 %319
      %v321 = vsel %vm251, %v146, 0.0
      %322 = vadd.xlane.f32.xlu0 %v321
      %v323 = vpop.xlane.xlu0 %322
      %v324 = vsel %vm251, %v147, 0.0
      %325 = vadd.xlane.f32.xlu0 %v324
      %v326 = vpop.xlane.xlu0 %325
      %v327 = vsel %vm251, %v148, 0.0
      %328 = vadd.xlane.f32.xlu0 %v327
      %v329 = vpop.xlane.xlu0 %328
      %v330 = vsel %vm251, %v149, 0.0
      %331 = vadd.xlane.f32.xlu0 %v330
      %v332 = vpop.xlane.xlu0 %331
      %v333 = vsel %vm251, %v150, 0.0
      %334 = vadd.xlane.f32.xlu0 %v333
      %v335 = vpop.xlane.xlu0 %334
      %v336 = vsel %vm251, %v151, 0.0
      %337 = vadd.xlane.f32.xlu0 %v336
      %v338 = vpop.xlane.xlu0 %337
      %v339 = vsel %vm251, %v152, 0.0
      %340 = vadd.xlane.f32.xlu0 %v339
      %v341 = vpop.xlane.xlu0 %340
      %v342 = vsel %vm251, %v153, 0.0
      %343 = vadd.xlane.f32.xlu0 %v342
      %v344 = vpop.xlane.xlu0 %343
      %v345 = vsel %vm251, %v154, 0.0
      %346 = vadd.xlane.f32.xlu0 %v345
      %v347 = vpop.xlane.xlu0 %346
      %v348 = vsel %vm251, %v155, 0.0
      %349 = vadd.xlane.f32.xlu0 %v348
      %v350 = vpop.xlane.xlu0 %349
      %v351 = vsel %vm251, %v156, 0.0
      %352 = vadd.xlane.f32.xlu0 %v351
      %v353 = vpop.xlane.xlu0 %352
      %v354 = vsel %vm251, %v157, 0.0
      %355 = vadd.xlane.f32.xlu0 %v354
      %v356 = vpop.xlane.xlu0 %355
      %v357 = vsel %vm251, %v158, 0.0
      %358 = vadd.xlane.f32.xlu0 %v357
      %v359 = vpop.xlane.xlu0 %358
      %v360 = vsel %vm251, %v159, 0.0
      %361 = vadd.xlane.f32.xlu0 %v360
      %v362 = vpop.xlane.xlu0 %361
      %v363 = vsel %vm251, %v160, 0.0
      %364 = vadd.xlane.f32.xlu0 %v363
      %v365 = vpop.xlane.xlu0 %364
      %v366 = vsel %vm251, %v161, 0.0
      %367 = vadd.xlane.f32.xlu0 %v366
      %v368 = vpop.xlane.xlu0 %367
      %v369 = vsel %vm251, %v162, 0.0
      %370 = vadd.xlane.f32.xlu0 %v369
      %v371 = vpop.xlane.xlu0 %370
      %v372 = vsel %vm251, %v163, 0.0
      %373 = vadd.xlane.f32.xlu0 %v372
      %v374 = vpop.xlane.xlu0 %373
      %v375 = vsel %vm251, %v164, 0.0
      %376 = vadd.xlane.f32.xlu0 %v375
      %v377 = vpop.xlane.xlu0 %376
      %v378 = vsel %vm251, %v165, 0.0
      %379 = vadd.xlane.f32.xlu0 %v378
      %v380 = vpop.xlane.xlu0 %379
      %v381 = vsel %vm251, %v166, 0.0
      %382 = vadd.xlane.f32.xlu0 %v381
      %v383 = vpop.xlane.xlu0 %382
      %v384 = vsel %vm251, %v167, 0.0
      %385 = vadd.xlane.f32.xlu0 %v384
      %v386 = vpop.xlane.xlu0 %385
      %v387 = vsel %vm251, %v168, 0.0
      %388 = vadd.xlane.f32.xlu0 %v387
      %v389 = vpop.xlane.xlu0 %388
      %v390 = vsel %vm251, %v169, 0.0
      %391 = vadd.xlane.f32.xlu0 %v390
      %v392 = vpop.xlane.xlu0 %391
      %v393 = vsel %vm251, %v170, 0.0
      %394 = vadd.xlane.f32.xlu0 %v393
      %v395 = vpop.xlane.xlu0 %394
      %v396 = vsel %vm251, %v171, 0.0
      %397 = vadd.xlane.f32.xlu0 %v396
      %v398 = vpop.xlane.xlu0 %397
      %v399 = vsel %vm251, %v172, 0.0
      %400 = vadd.xlane.f32.xlu0 %v399
      %v401 = vpop.xlane.xlu0 %400
      %v402 = vsel %vm251, %v173, 0.0
      %403 = vadd.xlane.f32.xlu0 %v402
      %v404 = vpop.xlane.xlu0 %403
      %v405 = vsel %vm251, %v174, 0.0
      %406 = vadd.xlane.f32.xlu0 %v405
      %v407 = vpop.xlane.xlu0 %406
      %v408 = vsel %vm251, %v175, 0.0
      %409 = vadd.xlane.f32.xlu0 %v408
      %v410 = vpop.xlane.xlu0 %409
      %v411 = vsel %vm251, %v176, 0.0
      %412 = vadd.xlane.f32.xlu0 %v411
      %v413 = vpop.xlane.xlu0 %412
      %v414 = vsel %vm251, %v177, 0.0
      %415 = vadd.xlane.f32.xlu0 %v414
      %v416 = vpop.xlane.xlu0 %415
      %v417 = vsel %vm251, %v178, 0.0
      %418 = vadd.xlane.f32.xlu0 %v417
      %v419 = vpop.xlane.xlu0 %418
      %v420 = vsel %vm251, %v179, 0.0
      %421 = vadd.xlane.f32.xlu0 %v420
      %v422 = vpop.xlane.xlu0 %421
      %v423 = vsel %vm251, %v180, 0.0
      %424 = vadd.xlane.f32.xlu0 %v423
      %v425 = vpop.xlane.xlu0 %424
      %v426 = vsel %vm251, %v181, 0.0
      %427 = vadd.xlane.f32.xlu0 %v426
      %v428 = vpop.xlane.xlu0 %427
      %v429 = vsel %vm251, %v182, 0.0
      %430 = vadd.xlane.f32.xlu0 %v429
      %v431 = vpop.xlane.xlu0 %430
      %v432 = vsel %vm251, %v183, 0.0
      %433 = vadd.xlane.f32.xlu0 %v432
      %v434 = vpop.xlane.xlu0 %433
      %v435 = vsel %vm251, %v184, 0.0
      %436 = vadd.xlane.f32.xlu0 %v435
      %v437 = vpop.xlane.xlu0 %436
      %v438 = vsel %vm251, %v185, 0.0
      %439 = vadd.xlane.f32.xlu0 %v438
      %v440 = vpop.xlane.xlu0 %439
      %v441 = vsel %vm251, %v186, 0.0
      %442 = vadd.xlane.f32.xlu0 %v441
      %v443 = vpop.xlane.xlu0 %442
      %v444 = vsel %vm251, %v187, 0.0
      %445 = vadd.xlane.f32.xlu0 %v444
      %v446 = vpop.xlane.xlu0 %445
      %v447 = vsel %vm251, %v188, 0.0
      %448 = vadd.xlane.f32.xlu0 %v447
      %v449 = vpop.xlane.xlu0 %448
      %v450 = vsel %vm251, %v189, 0.0
      %451 = vadd.xlane.f32.xlu0 %v450
      %v452 = vpop.xlane.xlu0 %451
      %v453 = vsel %vm251, %v190, 0.0
      %454 = vadd.xlane.f32.xlu0 %v453
      %v455 = vpop.xlane.xlu0 %454
      %v456 = vsel %vm251, %v191, 0.0
      %457 = vadd.xlane.f32.xlu0 %v456
      %v458 = vpop.xlane.xlu0 %457
      %v459 = vsel %vm251, %v192, 0.0
      %460 = vadd.xlane.f32.xlu0 %v459
      %v461 = vpop.xlane.xlu0 %460
      %v462 = vsel %vm251, %v193, 0.0
      %463 = vadd.xlane.f32.xlu0 %v462
      %v464 = vpop.xlane.xlu0 %463
      %v465 = vsel %vm251, %v194, 0.0
      %466 = vadd.xlane.f32.xlu0 %v465
      %v467 = vpop.xlane.xlu0 %466
      %v468 = vsel %vm251, %v195, 0.0
      %469 = vadd.xlane.f32.xlu0 %v468
      %v470 = vpop.xlane.xlu0 %469
      %v471 = vsel %vm251, %v196, 0.0
      %472 = vadd.xlane.f32.xlu0 %v471
      %v473 = vpop.xlane.xlu0 %472
      %v474 = vsel %vm251, %v197, 0.0
      %475 = vadd.xlane.f32.xlu0 %v474
      %v476 = vpop.xlane.xlu0 %475
      %v477 = vsel %vm251, %v198, 0.0
      %478 = vadd.xlane.f32.xlu0 %v477
      %v479 = vpop.xlane.xlu0 %478
      %v480 = vsel %vm251, %v199, 0.0
      %481 = vadd.xlane.f32.xlu0 %v480
      %v482 = vpop.xlane.xlu0 %481
      %v483 = vsel %vm251, %v200, 0.0
      %484 = vadd.xlane.f32.xlu0 %v483
      %v485 = vpop.xlane.xlu0 %484
      %v486 = vsel %vm251, %v201, 0.0
      %487 = vadd.xlane.f32.xlu0 %v486
      %v488 = vpop.xlane.xlu0 %487
      %v489 = vsel %vm251, %v202, 0.0
      %490 = vadd.xlane.f32.xlu0 %v489
      %v491 = vpop.xlane.xlu0 %490
      %v492 = vsel %vm251, %v203, 0.0
      %493 = vadd.xlane.f32.xlu0 %v492
      %v494 = vpop.xlane.xlu0 %493
      %v495 = vsel %vm251, %v204, 0.0
      %496 = vadd.xlane.f32.xlu0 %v495
      %v497 = vpop.xlane.xlu0 %496
      %v498 = vsel %vm251, %v205, 0.0
      %499 = vadd.xlane.f32.xlu0 %v498
      %v500 = vpop.xlane.xlu0 %499
      %v501 = vsel %vm251, %v206, 0.0
      %502 = vadd.xlane.f32.xlu0 %v501
      %v503 = vpop.xlane.xlu0 %502
      %v504 = vsel %vm251, %v207, 0.0
      %505 = vadd.xlane.f32.xlu0 %v504
      %v506 = vpop.xlane.xlu0 %505
      %v507 = vsel %vm251, %v208, 0.0
      %508 = vadd.xlane.f32.xlu0 %v507
      %v509 = vpop.xlane.xlu0 %508
      %v510 = vsel %vm251, %v209, 0.0
      %511 = vadd.xlane.f32.xlu0 %v510
      %v512 = vpop.xlane.xlu0 %511
      %v513 = vsel %vm251, %v210, 0.0
      %514 = vadd.xlane.f32.xlu0 %v513
      %v515 = vpop.xlane.xlu0 %514
      %v516 = vsel %vm251, %v211, 0.0
      %517 = vadd.xlane.f32.xlu0 %v516
      %v518 = vpop.xlane.xlu0 %517
      %v519 = vsel %vm251, %v212, 0.0
      %520 = vadd.xlane.f32.xlu0 %v519
      %v521 = vpop.xlane.xlu0 %520
      %v522 = vsel %vm251, %v213, 0.0
      %523 = vadd.xlane.f32.xlu0 %v522
      %v524 = vpop.xlane.xlu0 %523
      %v525 = vsel %vm251, %v214, 0.0
      %526 = vadd.xlane.f32.xlu0 %v525
      %v527 = vpop.xlane.xlu0 %526
      %v528 = vsel %vm251, %v215, 0.0
      %529 = vadd.xlane.f32.xlu0 %v528
      %v530 = vpop.xlane.xlu0 %529
      %v531 = vsel %vm251, %v216, 0.0
      %532 = vadd.xlane.f32.xlu0 %v531
      %v533 = vpop.xlane.xlu0 %532
      %v534 = vsel %vm251, %v217, 0.0
      %535 = vadd.xlane.f32.xlu0 %v534
      %v536 = vpop.xlane.xlu0 %535
      %v537 = vsel %vm251, %v218, 0.0
      %538 = vadd.xlane.f32.xlu0 %v537
      %v539 = vpop.xlane.xlu0 %538
      %v540 = vsel %vm251, %v219, 0.0
      %541 = vadd.xlane.f32.xlu0 %v540
      %v542 = vpop.xlane.xlu0 %541
      %v543 = vsel %vm251, %v220, 0.0
      %544 = vadd.xlane.f32.xlu0 %v543
      %v545 = vpop.xlane.xlu0 %544
      %v546 = vsel %vm251, %v221, 0.0
      %547 = vadd.xlane.f32.xlu0 %v546
      %v548 = vpop.xlane.xlu0 %547
      %v549 = vsel %vm251, %v222, 0.0
      %550 = vadd.xlane.f32.xlu0 %v549
      %v551 = vpop.xlane.xlu0 %550
      %v552 = vsel %vm251, %v223, 0.0
      %553 = vadd.xlane.f32.xlu0 %v552
      %v554 = vpop.xlane.xlu0 %553
      %v555 = vsel %vm251, %v224, 0.0
      %556 = vadd.xlane.f32.xlu0 %v555
      %v557 = vpop.xlane.xlu0 %556
      %v558 = vsel %vm251, %v225, 0.0
      %559 = vadd.xlane.f32.xlu0 %v558
      %v560 = vpop.xlane.xlu0 %559
      %v561 = vsel %vm251, %v226, 0.0
      %562 = vadd.xlane.f32.xlu0 %v561
      %v563 = vpop.xlane.xlu0 %562
      %v564 = vsel %vm251, %v227, 0.0
      %565 = vadd.xlane.f32.xlu0 %v564
      %v566 = vpop.xlane.xlu0 %565
      %v567 = vsel %vm251, %v228, 0.0
      %568 = vadd.xlane.f32.xlu0 %v567
      %v569 = vpop.xlane.xlu0 %568
      %v570 = vsel %vm251, %v229, 0.0
      %571 = vadd.xlane.f32.xlu0 %v570
      %v572 = vpop.xlane.xlu0 %571
      %v573 = vsel %vm251, %v230, 0.0
      %574 = vadd.xlane.f32.xlu0 %v573
      %v575 = vpop.xlane.xlu0 %574
      %v576 = vsel %vm251, %v231, 0.0
      %577 = vadd.xlane.f32.xlu0 %v576
      %v578 = vpop.xlane.xlu0 %577
      %v579 = vsel %vm251, %v232, 0.0
      %580 = vadd.xlane.f32.xlu0 %v579
      %v581 = vpop.xlane.xlu0 %580
      %v582 = vsel %vm251, %v233, 0.0
      %583 = vadd.xlane.f32.xlu0 %v582
      %v584 = vpop.xlane.xlu0 %583
      %v585 = vsel %vm251, %v234, 0.0
      %586 = vadd.xlane.f32.xlu0 %v585
      %v587 = vpop.xlane.xlu0 %586
      %v588 = vsel %vm251, %v235, 0.0
      %589 = vadd.xlane.f32.xlu0 %v588
      %v590 = vpop.xlane.xlu0 %589
      %v591 = vsel %vm251, %v236, 0.0
      %592 = vadd.xlane.f32.xlu0 %v591
      %v593 = vpop.xlane.xlu0 %592
      %v594 = vsel %vm251, %v237, 0.0
      %595 = vadd.xlane.f32.xlu0 %v594
      %v596 = vpop.xlane.xlu0 %595
      %v597 = vsel %vm251, %v238, 0.0
      %598 = vadd.xlane.f32.xlu0 %v597
      %v599 = vpop.xlane.xlu0 %598
      %v600 = vsel %vm251, %v239, 0.0
      %601 = vadd.xlane.f32.xlu0 %v600
      %v602 = vpop.xlane.xlu0 %601
      %v603 = vsel %vm251, %v240, 0.0
      %604 = vadd.xlane.f32.xlu0 %v603
      %v605 = vpop.xlane.xlu0 %604
      %v606 = vsel %vm251, %v241, 0.0
      %607 = vadd.xlane.f32.xlu0 %v606
      %v608 = vpop.xlane.xlu0 %607
      %v609 = vsel %vm251, %v242, 0.0
      %610 = vadd.xlane.f32.xlu0 %v609
      %v611 = vpop.xlane.xlu0 %610
      %v612 = vsel %vm251, %v243, 0.0
      %613 = vadd.xlane.f32.xlu0 %v612
      %v614 = vpop.xlane.xlu0 %613
      %v615 = vsel %vm251, %v244, 0.0
      %616 = vadd.xlane.f32.xlu0 %v615
      %v617 = vpop.xlane.xlu0 %616
      %v618 = vsel %vm251, %v245, 0.0
      %619 = vadd.xlane.f32.xlu0 %v618
      %v620 = vpop.xlane.xlu0 %619
      %v621 = vsel %vm251, %v246, 0.0
      %622 = vadd.xlane.f32.xlu0 %v621
      %v623 = vpop.xlane.xlu0 %622
      %v624 = vsel %vm251, %v247, 0.0
      %625 = vadd.xlane.f32.xlu0 %v624
      %v626 = vpop.xlane.xlu0 %625
      %v627 = vsel %vm251, %v248, 0.0
      %628 = vadd.xlane.f32.xlu0 %v627
      %v629 = vpop.xlane.xlu0 %628
      %v630 = vsel %vm251, %v249, 0.0
      %631 = vadd.xlane.f32.xlu0 %v630
      %v632 = vpop.xlane.xlu0 %631
      %v633 = vsel %vm251, %v250, 0.0
      %634 = vadd.xlane.f32.xlu0 %v633
      %v635 = vpop.xlane.xlu0 %634
      %v636 = vrcp.pop 16.0
      %v637 = vmul.f32 %v254, %v636
      %v638 = vmul.f32 %v257, %v636
      %v639 = vmul.f32 %v260, %v636
      %v640 = vmul.f32 %v263, %v636
      %v641 = vmul.f32 %v266, %v636
      %v642 = vmul.f32 %v269, %v636
      %v643 = vmul.f32 %v272, %v636
      %v644 = vmul.f32 %v275, %v636
      %v645 = vmul.f32 %v278, %v636
      %v646 = vmul.f32 %v281, %v636
      %v647 = vmul.f32 %v284, %v636
      %v648 = vmul.f32 %v287, %v636
      %v649 = vmul.f32 %v290, %v636
      %v650 = vmul.f32 %v293, %v636
      %v651 = vmul.f32 %v296, %v636
      %v652 = vmul.f32 %v299, %v636
      %v653 = vmul.f32 %v302, %v636
      %v654 = vmul.f32 %v305, %v636
      %v655 = vmul.f32 %v308, %v636
      %v656 = vmul.f32 %v311, %v636
      %v657 = vmul.f32 %v314, %v636
      %v658 = vmul.f32 %v317, %v636
      %v659 = vmul.f32 %v320, %v636
      %v660 = vmul.f32 %v323, %v636
      %v661 = vmul.f32 %v326, %v636
      %v662 = vmul.f32 %v329, %v636
      %v663 = vmul.f32 %v332, %v636
      %v664 = vmul.f32 %v335, %v636
      %v665 = vmul.f32 %v338, %v636
      %v666 = vmul.f32 %v341, %v636
      %v667 = vmul.f32 %v344, %v636
      %v668 = vmul.f32 %v347, %v636
      %v669 = vmul.f32 %v350, %v636
      %v670 = vmul.f32 %v353, %v636
      %v671 = vmul.f32 %v356, %v636
      %v672 = vmul.f32 %v359, %v636
      %v673 = vmul.f32 %v362, %v636
      %v674 = vmul.f32 %v365, %v636
      %v675 = vmul.f32 %v368, %v636
      %v676 = vmul.f32 %v371, %v636
      %v677 = vmul.f32 %v374, %v636
      %v678 = vmul.f32 %v377, %v636
      %v679 = vmul.f32 %v380, %v636
      %v680 = vmul.f32 %v383, %v636
      %v681 = vmul.f32 %v386, %v636
      %v682 = vmul.f32 %v389, %v636
      %v683 = vmul.f32 %v392, %v636
      %v684 = vmul.f32 %v395, %v636
      %v685 = vmul.f32 %v398, %v636
      %v686 = vmul.f32 %v401, %v636
      %v687 = vmul.f32 %v404, %v636
      %v688 = vmul.f32 %v407, %v636
      %v689 = vmul.f32 %v410, %v636
      %v690 = vmul.f32 %v413, %v636
      %v691 = vmul.f32 %v416, %v636
      %v692 = vmul.f32 %v419, %v636
      %v693 = vmul.f32 %v422, %v636
      %v694 = vmul.f32 %v425, %v636
      %v695 = vmul.f32 %v428, %v636
      %v696 = vmul.f32 %v431, %v636
      %v697 = vmul.f32 %v434, %v636
      %v698 = vmul.f32 %v437, %v636
      %v699 = vmul.f32 %v440, %v636
      %v700 = vmul.f32 %v443, %v636
      %v701 = vmul.f32 %v446, %v636
      %v702 = vmul.f32 %v449, %v636
      %v703 = vmul.f32 %v452, %v636
      %v704 = vmul.f32 %v455, %v636
      %v705 = vmul.f32 %v458, %v636
      %v706 = vmul.f32 %v461, %v636
      %v707 = vmul.f32 %v464, %v636
      %v708 = vmul.f32 %v467, %v636
      %v709 = vmul.f32 %v470, %v636
      %v710 = vmul.f32 %v473, %v636
      %v711 = vmul.f32 %v476, %v636
      %v712 = vmul.f32 %v479, %v636
      %v713 = vmul.f32 %v482, %v636
      %v714 = vmul.f32 %v485, %v636
      %v715 = vmul.f32 %v488, %v636
      %v716 = vmul.f32 %v491, %v636
      %v717 = vmul.f32 %v494, %v636
      %v718 = vmul.f32 %v497, %v636
      %v719 = vmul.f32 %v500, %v636
      %v720 = vmul.f32 %v503, %v636
      %v721 = vmul.f32 %v506, %v636
      %v722 = vmul.f32 %v509, %v636
      %v723 = vmul.f32 %v512, %v636
      %v724 = vmul.f32 %v515, %v636
      %v725 = vmul.f32 %v518, %v636
      %v726 = vmul.f32 %v521, %v636
      %v727 = vmul.f32 %v524, %v636
      %v728 = vmul.f32 %v527, %v636
      %v729 = vmul.f32 %v530, %v636
      %v730 = vmul.f32 %v533, %v636
      %v731 = vmul.f32 %v536, %v636
      %v732 = vmul.f32 %v539, %v636
      %v733 = vmul.f32 %v542, %v636
      %v734 = vmul.f32 %v545, %v636
      %v735 = vmul.f32 %v548, %v636
      %v736 = vmul.f32 %v551, %v636
      %v737 = vmul.f32 %v554, %v636
      %v738 = vmul.f32 %v557, %v636
      %v739 = vmul.f32 %v560, %v636
      %v740 = vmul.f32 %v563, %v636
      %v741 = vmul.f32 %v566, %v636
      %v742 = vmul.f32 %v569, %v636
      %v743 = vmul.f32 %v572, %v636
      %v744 = vmul.f32 %v575, %v636
      %v745 = vmul.f32 %v578, %v636
      %v746 = vmul.f32 %v581, %v636
      %v747 = vmul.f32 %v584, %v636
      %v748 = vmul.f32 %v587, %v636
      %v749 = vmul.f32 %v590, %v636
      %v750 = vmul.f32 %v593, %v636
      %v751 = vmul.f32 %v596, %v636
      %v752 = vmul.f32 %v599, %v636
      %v753 = vmul.f32 %v602, %v636
      %v754 = vmul.f32 %v605, %v636
      %v755 = vmul.f32 %v608, %v636
      %v756 = vmul.f32 %v611, %v636
      %v757 = vmul.f32 %v614, %v636
      %v758 = vmul.f32 %v617, %v636
      %v759 = vmul.f32 %v620, %v636
      %v760 = vmul.f32 %v623, %v636
      %v761 = vmul.f32 %v626, %v636
      %v762 = vmul.f32 %v629, %v636
      %v763 = vmul.f32 %v632, %v636
      %v764 = vmul.f32 %v635, %v636
      %v765 = vpack.c.bf16 %v638, %v637
      %v766 = vpack.c.bf16 %v640, %v639
      %v767 = vpack.c.bf16 %v642, %v641
      %v768 = vpack.c.bf16 %v644, %v643
      %v769 = vpack.c.bf16 %v646, %v645
      %v770 = vpack.c.bf16 %v648, %v647
      %v771 = vpack.c.bf16 %v650, %v649
      %v772 = vpack.c.bf16 %v652, %v651
      %v773 = vpack.c.bf16 %v654, %v653
      %v774 = vpack.c.bf16 %v656, %v655
      %v775 = vpack.c.bf16 %v658, %v657
      %v776 = vpack.c.bf16 %v660, %v659
      %v777 = vpack.c.bf16 %v662, %v661
      %v778 = vpack.c.bf16 %v664, %v663
      %v779 = vpack.c.bf16 %v666, %v665
      %v780 = vpack.c.bf16 %v668, %v667
      %v781 = vpack.c.bf16 %v670, %v669
      %v782 = vpack.c.bf16 %v672, %v671
      %v783 = vpack.c.bf16 %v674, %v673
      %v784 = vpack.c.bf16 %v676, %v675
      %v785 = vpack.c.bf16 %v678, %v677
      %v786 = vpack.c.bf16 %v680, %v679
      %v787 = vpack.c.bf16 %v682, %v681
      %v788 = vpack.c.bf16 %v684, %v683
      %v789 = vpack.c.bf16 %v686, %v685
      %v790 = vpack.c.bf16 %v688, %v687
      %v791 = vpack.c.bf16 %v690, %v689
      %v792 = vpack.c.bf16 %v692, %v691
      %v793 = vpack.c.bf16 %v694, %v693
      %v794 = vpack.c.bf16 %v696, %v695
      %v795 = vpack.c.bf16 %v698, %v697
      %v796 = vpack.c.bf16 %v700, %v699
      %v797 = vpack.c.bf16 %v702, %v701
      %v798 = vpack.c.bf16 %v704, %v703
      %v799 = vpack.c.bf16 %v706, %v705
      %v800 = vpack.c.bf16 %v708, %v707
      %v801 = vpack.c.bf16 %v710, %v709
      %v802 = vpack.c.bf16 %v712, %v711
      %v803 = vpack.c.bf16 %v714, %v713
      %v804 = vpack.c.bf16 %v716, %v715
      %v805 = vpack.c.bf16 %v718, %v717
      %v806 = vpack.c.bf16 %v720, %v719
      %v807 = vpack.c.bf16 %v722, %v721
      %v808 = vpack.c.bf16 %v724, %v723
      %v809 = vpack.c.bf16 %v726, %v725
      %v810 = vpack.c.bf16 %v728, %v727
      %v811 = vpack.c.bf16 %v730, %v729
      %v812 = vpack.c.bf16 %v732, %v731
      %v813 = vpack.c.bf16 %v734, %v733
      %v814 = vpack.c.bf16 %v736, %v735
      %v815 = vpack.c.bf16 %v738, %v737
      %v816 = vpack.c.bf16 %v740, %v739
      %v817 = vpack.c.bf16 %v742, %v741
      %v818 = vpack.c.bf16 %v744, %v743
      %v819 = vpack.c.bf16 %v746, %v745
      %v820 = vpack.c.bf16 %v748, %v747
      %v821 = vpack.c.bf16 %v750, %v749
      %v822 = vpack.c.bf16 %v752, %v751
      %v823 = vpack.c.bf16 %v754, %v753
      %v824 = vpack.c.bf16 %v756, %v755
      %v825 = vpack.c.bf16 %v758, %v757
      %v826 = vpack.c.bf16 %v760, %v759
      %v827 = vpack.c.bf16 %v762, %v761
      %v828 = vpack.c.bf16 %v764, %v763
      %v894 = vunpack.c.l.s4 839922192
      %v895 = vunpack.c.0.s8 %v894
      %v896 = vlaneseq
      %v897 = vshrl.u32 %v896, 7
      %v898 = vsub.s32 %v895, %v897
      %v899 = vrot.slane %v765, %v898
      %v901 = vunpack.c.l.s4 1985246804
      %v902 = vunpack.c.0.s8 %v901
      %v903 = vlaneseq
      %v904 = vshrl.u32 %v903, 7
      %v905 = vsub.s32 %v902, %v904
      %v906 = vrot.slane %v765, %v905
      %v908 = vunpack.c.l.s4 839922192
      %v909 = vunpack.c.0.s8 %v908
      %v910 = vlaneseq
      %v911 = vshrl.u32 %v910, 7
      %v912 = vsub.s32 %v909, %v911
      %v913 = vrot.slane %v766, %v912
      %v915 = vunpack.c.l.s4 1985246804
      %v916 = vunpack.c.0.s8 %v915
      %v917 = vlaneseq
      %v918 = vshrl.u32 %v917, 7
      %v919 = vsub.s32 %v916, %v918
      %v920 = vrot.slane %v766, %v919
      %v922 = vunpack.c.l.s4 839922192
      %v923 = vunpack.c.0.s8 %v922
      %v924 = vlaneseq
      %v925 = vshrl.u32 %v924, 7
      %v926 = vsub.s32 %v923, %v925
      %v927 = vrot.slane %v767, %v926
      %v929 = vunpack.c.l.s4 1985246804
      %v930 = vunpack.c.0.s8 %v929
      %v931 = vlaneseq
      %v932 = vshrl.u32 %v931, 7
      %v933 = vsub.s32 %v930, %v932
      %v934 = vrot.slane %v767, %v933
      %v936 = vunpack.c.l.s4 839922192
      %v937 = vunpack.c.0.s8 %v936
      %v938 = vlaneseq
      %v939 = vshrl.u32 %v938, 7
      %v940 = vsub.s32 %v937, %v939
      %v941 = vrot.slane %v768, %v940
      %v943 = vunpack.c.l.s4 1985246804
      %v944 = vunpack.c.0.s8 %v943
      %v945 = vlaneseq
      %v946 = vshrl.u32 %v945, 7
      %v947 = vsub.s32 %v944, %v946
      %v948 = vrot.slane %v768, %v947
      %v950 = vunpack.c.l.s4 839922192
      %v951 = vunpack.c.0.s8 %v950
      %v952 = vlaneseq
      %v953 = vshrl.u32 %v952, 7
      %v954 = vsub.s32 %v951, %v953
      %v955 = vrot.slane %v769, %v954
      %v957 = vunpack.c.l.s4 1985246804
      %v958 = vunpack.c.0.s8 %v957
      %v959 = vlaneseq
      %v960 = vshrl.u32 %v959, 7
      %v961 = vsub.s32 %v958, %v960
      %v962 = vrot.slane %v769, %v961
      %v964 = vunpack.c.l.s4 839922192
      %v965 = vunpack.c.0.s8 %v964
      %v966 = vlaneseq
      %v967 = vshrl.u32 %v966, 7
      %v968 = vsub.s32 %v965, %v967
      %v969 = vrot.slane %v770, %v968
      %v971 = vunpack.c.l.s4 1985246804
      %v972 = vunpack.c.0.s8 %v971
      %v973 = vlaneseq
      %v974 = vshrl.u32 %v973, 7
      %v975 = vsub.s32 %v972, %v974
      %v976 = vrot.slane %v770, %v975
      %v978 = vunpack.c.l.s4 839922192
      %v979 = vunpack.c.0.s8 %v978
      %v980 = vlaneseq
      %v981 = vshrl.u32 %v980, 7
      %v982 = vsub.s32 %v979, %v981
      %v983 = vrot.slane %v771, %v982
      %v985 = vunpack.c.l.s4 1985246804
      %v986 = vunpack.c.0.s8 %v985
      %v987 = vlaneseq
      %v988 = vshrl.u32 %v987, 7
      %v989 = vsub.s32 %v986, %v988
      %v990 = vrot.slane %v771, %v989
      %v992 = vunpack.c.l.s4 839922192
      %v993 = vunpack.c.0.s8 %v992
      %v994 = vlaneseq
      %v995 = vshrl.u32 %v994, 7
      %v996 = vsub.s32 %v993, %v995
      %v997 = vrot.slane %v772, %v996
      %v999 = vunpack.c.l.s4 1985246804
      %v1000 = vunpack.c.0.s8 %v999
      %v1001 = vlaneseq
      %v1002 = vshrl.u32 %v1001, 7
      %v1003 = vsub.s32 %v1000, %v1002
      %v1004 = vrot.slane %v772, %v1003
      %v1006 = vunpack.c.l.s4 839922192
      %v1007 = vunpack.c.0.s8 %v1006
      %v1008 = vlaneseq
      %v1009 = vshrl.u32 %v1008, 7
      %v1010 = vsub.s32 %v1007, %v1009
      %v1011 = vrot.slane %v773, %v1010
      %v1013 = vunpack.c.l.s4 1985246804
      %v1014 = vunpack.c.0.s8 %v1013
      %v1015 = vlaneseq
      %v1016 = vshrl.u32 %v1015, 7
      %v1017 = vsub.s32 %v1014, %v1016
      %v1018 = vrot.slane %v773, %v1017
      %v1020 = vunpack.c.l.s4 839922192
      %v1021 = vunpack.c.0.s8 %v1020
      %v1022 = vlaneseq
      %v1023 = vshrl.u32 %v1022, 7
      %v1024 = vsub.s32 %v1021, %v1023
      %v1025 = vrot.slane %v774, %v1024
      %v1027 = vunpack.c.l.s4 1985246804
      %v1028 = vunpack.c.0.s8 %v1027
      %v1029 = vlaneseq
      %v1030 = vshrl.u32 %v1029, 7
      %v1031 = vsub.s32 %v1028, %v1030
      %v1032 = vrot.slane %v774, %v1031
      %v1034 = vunpack.c.l.s4 839922192
      %v1035 = vunpack.c.0.s8 %v1034
      %v1036 = vlaneseq
      %v1037 = vshrl.u32 %v1036, 7
      %v1038 = vsub.s32 %v1035, %v1037
      %v1039 = vrot.slane %v775, %v1038
      %v1041 = vunpack.c.l.s4 1985246804
      %v1042 = vunpack.c.0.s8 %v1041
      %v1043 = vlaneseq
      %v1044 = vshrl.u32 %v1043, 7
      %v1045 = vsub.s32 %v1042, %v1044
      %v1046 = vrot.slane %v775, %v1045
      %v1048 = vunpack.c.l.s4 839922192
      %v1049 = vunpack.c.0.s8 %v1048
      %v1050 = vlaneseq
      %v1051 = vshrl.u32 %v1050, 7
      %v1052 = vsub.s32 %v1049, %v1051
      %v1053 = vrot.slane %v776, %v1052
      %v1055 = vunpack.c.l.s4 1985246804
      %v1056 = vunpack.c.0.s8 %v1055
      %v1057 = vlaneseq
      %v1058 = vshrl.u32 %v1057, 7
      %v1059 = vsub.s32 %v1056, %v1058
      %v1060 = vrot.slane %v776, %v1059
      %v1062 = vunpack.c.l.s4 839922192
      %v1063 = vunpack.c.0.s8 %v1062
      %v1064 = vlaneseq
      %v1065 = vshrl.u32 %v1064, 7
      %v1066 = vsub.s32 %v1063, %v1065
      %v1067 = vrot.slane %v777, %v1066
      %v1069 = vunpack.c.l.s4 1985246804
      %v1070 = vunpack.c.0.s8 %v1069
      %v1071 = vlaneseq
      %v1072 = vshrl.u32 %v1071, 7
      %v1073 = vsub.s32 %v1070, %v1072
      %v1074 = vrot.slane %v777, %v1073
      %v1076 = vunpack.c.l.s4 839922192
      %v1077 = vunpack.c.0.s8 %v1076
      %v1078 = vlaneseq
      %v1079 = vshrl.u32 %v1078, 7
      %v1080 = vsub.s32 %v1077, %v1079
      %v1081 = vrot.slane %v778, %v1080
      %v1083 = vunpack.c.l.s4 1985246804
      %v1084 = vunpack.c.0.s8 %v1083
      %v1085 = vlaneseq
      %v1086 = vshrl.u32 %v1085, 7
      %v1087 = vsub.s32 %v1084, %v1086
      %v1088 = vrot.slane %v778, %v1087
      %v1090 = vunpack.c.l.s4 839922192
      %v1091 = vunpack.c.0.s8 %v1090
      %v1092 = vlaneseq
      %v1093 = vshrl.u32 %v1092, 7
      %v1094 = vsub.s32 %v1091, %v1093
      %v1095 = vrot.slane %v779, %v1094
      %v1097 = vunpack.c.l.s4 1985246804
      %v1098 = vunpack.c.0.s8 %v1097
      %v1099 = vlaneseq
      %v1100 = vshrl.u32 %v1099, 7
      %v1101 = vsub.s32 %v1098, %v1100
      %v1102 = vrot.slane %v779, %v1101
      %v1104 = vunpack.c.l.s4 839922192
      %v1105 = vunpack.c.0.s8 %v1104
      %v1106 = vlaneseq
      %v1107 = vshrl.u32 %v1106, 7
      %v1108 = vsub.s32 %v1105, %v1107
      %v1109 = vrot.slane %v780, %v1108
      %v1111 = vunpack.c.l.s4 1985246804
      %v1112 = vunpack.c.0.s8 %v1111
      %v1113 = vlaneseq
      %v1114 = vshrl.u32 %v1113, 7
      %v1115 = vsub.s32 %v1112, %v1114
      %v1116 = vrot.slane %v780, %v1115
      %v1118 = vunpack.c.l.s4 839922192
      %v1119 = vunpack.c.0.s8 %v1118
      %v1120 = vlaneseq
      %v1121 = vshrl.u32 %v1120, 7
      %v1122 = vsub.s32 %v1119, %v1121
      %v1123 = vrot.slane %v781, %v1122
      %v1125 = vunpack.c.l.s4 1985246804
      %v1126 = vunpack.c.0.s8 %v1125
      %v1127 = vlaneseq
      %v1128 = vshrl.u32 %v1127, 7
      %v1129 = vsub.s32 %v1126, %v1128
      %v1130 = vrot.slane %v781, %v1129
      %v1132 = vunpack.c.l.s4 839922192
      %v1133 = vunpack.c.0.s8 %v1132
      %v1134 = vlaneseq
      %v1135 = vshrl.u32 %v1134, 7
      %v1136 = vsub.s32 %v1133, %v1135
      %v1137 = vrot.slane %v782, %v1136
      %v1139 = vunpack.c.l.s4 1985246804
      %v1140 = vunpack.c.0.s8 %v1139
      %v1141 = vlaneseq
      %v1142 = vshrl.u32 %v1141, 7
      %v1143 = vsub.s32 %v1140, %v1142
      %v1144 = vrot.slane %v782, %v1143
      %v1146 = vunpack.c.l.s4 839922192
      %v1147 = vunpack.c.0.s8 %v1146
      %v1148 = vlaneseq
      %v1149 = vshrl.u32 %v1148, 7
      %v1150 = vsub.s32 %v1147, %v1149
      %v1151 = vrot.slane %v783, %v1150
      %v1153 = vunpack.c.l.s4 1985246804
      %v1154 = vunpack.c.0.s8 %v1153
      %v1155 = vlaneseq
      %v1156 = vshrl.u32 %v1155, 7
      %v1157 = vsub.s32 %v1154, %v1156
      %v1158 = vrot.slane %v783, %v1157
      %v1160 = vunpack.c.l.s4 839922192
      %v1161 = vunpack.c.0.s8 %v1160
      %v1162 = vlaneseq
      %v1163 = vshrl.u32 %v1162, 7
      %v1164 = vsub.s32 %v1161, %v1163
      %v1165 = vrot.slane %v784, %v1164
      %v1167 = vunpack.c.l.s4 1985246804
      %v1168 = vunpack.c.0.s8 %v1167
      %v1169 = vlaneseq
      %v1170 = vshrl.u32 %v1169, 7
      %v1171 = vsub.s32 %v1168, %v1170
      %v1172 = vrot.slane %v784, %v1171
      %v1174 = vunpack.c.l.s4 839922192
      %v1175 = vunpack.c.0.s8 %v1174
      %v1176 = vlaneseq
      %v1177 = vshrl.u32 %v1176, 7
      %v1178 = vsub.s32 %v1175, %v1177
      %v1179 = vrot.slane %v785, %v1178
      %v1181 = vunpack.c.l.s4 1985246804
      %v1182 = vunpack.c.0.s8 %v1181
      %v1183 = vlaneseq
      %v1184 = vshrl.u32 %v1183, 7
      %v1185 = vsub.s32 %v1182, %v1184
      %v1186 = vrot.slane %v785, %v1185
      %v1188 = vunpack.c.l.s4 839922192
      %v1189 = vunpack.c.0.s8 %v1188
      %v1190 = vlaneseq
      %v1191 = vshrl.u32 %v1190, 7
      %v1192 = vsub.s32 %v1189, %v1191
      %v1193 = vrot.slane %v786, %v1192
      %v1195 = vunpack.c.l.s4 1985246804
      %v1196 = vunpack.c.0.s8 %v1195
      %v1197 = vlaneseq
      %v1198 = vshrl.u32 %v1197, 7
      %v1199 = vsub.s32 %v1196, %v1198
      %v1200 = vrot.slane %v786, %v1199
      %v1202 = vunpack.c.l.s4 839922192
      %v1203 = vunpack.c.0.s8 %v1202
      %v1204 = vlaneseq
      %v1205 = vshrl.u32 %v1204, 7
      %v1206 = vsub.s32 %v1203, %v1205
      %v1207 = vrot.slane %v787, %v1206
      %v1209 = vunpack.c.l.s4 1985246804
      %v1210 = vunpack.c.0.s8 %v1209
      %v1211 = vlaneseq
      %v1212 = vshrl.u32 %v1211, 7
      %v1213 = vsub.s32 %v1210, %v1212
      %v1214 = vrot.slane %v787, %v1213
      %v1216 = vunpack.c.l.s4 839922192
      %v1217 = vunpack.c.0.s8 %v1216
      %v1218 = vlaneseq
      %v1219 = vshrl.u32 %v1218, 7
      %v1220 = vsub.s32 %v1217, %v1219
      %v1221 = vrot.slane %v788, %v1220
      %v1223 = vunpack.c.l.s4 1985246804
      %v1224 = vunpack.c.0.s8 %v1223
      %v1225 = vlaneseq
      %v1226 = vshrl.u32 %v1225, 7
      %v1227 = vsub.s32 %v1224, %v1226
      %v1228 = vrot.slane %v788, %v1227
      %v1230 = vunpack.c.l.s4 839922192
      %v1231 = vunpack.c.0.s8 %v1230
      %v1232 = vlaneseq
      %v1233 = vshrl.u32 %v1232, 7
      %v1234 = vsub.s32 %v1231, %v1233
      %v1235 = vrot.slane %v789, %v1234
      %v1237 = vunpack.c.l.s4 1985246804
      %v1238 = vunpack.c.0.s8 %v1237
      %v1239 = vlaneseq
      %v1240 = vshrl.u32 %v1239, 7
      %v1241 = vsub.s32 %v1238, %v1240
      %v1242 = vrot.slane %v789, %v1241
      %v1244 = vunpack.c.l.s4 839922192
      %v1245 = vunpack.c.0.s8 %v1244
      %v1246 = vlaneseq
      %v1247 = vshrl.u32 %v1246, 7
      %v1248 = vsub.s32 %v1245, %v1247
      %v1249 = vrot.slane %v790, %v1248
      %v1251 = vunpack.c.l.s4 1985246804
      %v1252 = vunpack.c.0.s8 %v1251
      %v1253 = vlaneseq
      %v1254 = vshrl.u32 %v1253, 7
      %v1255 = vsub.s32 %v1252, %v1254
      %v1256 = vrot.slane %v790, %v1255
      %v1258 = vunpack.c.l.s4 839922192
      %v1259 = vunpack.c.0.s8 %v1258
      %v1260 = vlaneseq
      %v1261 = vshrl.u32 %v1260, 7
      %v1262 = vsub.s32 %v1259, %v1261
      %v1263 = vrot.slane %v791, %v1262
      %v1265 = vunpack.c.l.s4 1985246804
      %v1266 = vunpack.c.0.s8 %v1265
      %v1267 = vlaneseq
      %v1268 = vshrl.u32 %v1267, 7
      %v1269 = vsub.s32 %v1266, %v1268
      %v1270 = vrot.slane %v791, %v1269
      %v1272 = vunpack.c.l.s4 839922192
      %v1273 = vunpack.c.0.s8 %v1272
      %v1274 = vlaneseq
      %v1275 = vshrl.u32 %v1274, 7
      %v1276 = vsub.s32 %v1273, %v1275
      %v1277 = vrot.slane %v792, %v1276
      %v1279 = vunpack.c.l.s4 1985246804
      %v1280 = vunpack.c.0.s8 %v1279
      %v1281 = vlaneseq
      %v1282 = vshrl.u32 %v1281, 7
      %v1283 = vsub.s32 %v1280, %v1282
      %v1284 = vrot.slane %v792, %v1283
      %v1286 = vunpack.c.l.s4 839922192
      %v1287 = vunpack.c.0.s8 %v1286
      %v1288 = vlaneseq
      %v1289 = vshrl.u32 %v1288, 7
      %v1290 = vsub.s32 %v1287, %v1289
      %v1291 = vrot.slane %v793, %v1290
      %v1293 = vunpack.c.l.s4 1985246804
      %v1294 = vunpack.c.0.s8 %v1293
      %v1295 = vlaneseq
      %v1296 = vshrl.u32 %v1295, 7
      %v1297 = vsub.s32 %v1294, %v1296
      %v1298 = vrot.slane %v793, %v1297
      %v1300 = vunpack.c.l.s4 839922192
      %v1301 = vunpack.c.0.s8 %v1300
      %v1302 = vlaneseq
      %v1303 = vshrl.u32 %v1302, 7
      %v1304 = vsub.s32 %v1301, %v1303
      %v1305 = vrot.slane %v794, %v1304
      %v1307 = vunpack.c.l.s4 1985246804
      %v1308 = vunpack.c.0.s8 %v1307
      %v1309 = vlaneseq
      %v1310 = vshrl.u32 %v1309, 7
      %v1311 = vsub.s32 %v1308, %v1310
      %v1312 = vrot.slane %v794, %v1311
      %v1314 = vunpack.c.l.s4 839922192
      %v1315 = vunpack.c.0.s8 %v1314
      %v1316 = vlaneseq
      %v1317 = vshrl.u32 %v1316, 7
      %v1318 = vsub.s32 %v1315, %v1317
      %v1319 = vrot.slane %v795, %v1318
      %v1321 = vunpack.c.l.s4 1985246804
      %v1322 = vunpack.c.0.s8 %v1321
      %v1323 = vlaneseq
      %v1324 = vshrl.u32 %v1323, 7
      %v1325 = vsub.s32 %v1322, %v1324
      %v1326 = vrot.slane %v795, %v1325
      %v1328 = vunpack.c.l.s4 839922192
      %v1329 = vunpack.c.0.s8 %v1328
      %v1330 = vlaneseq
      %v1331 = vshrl.u32 %v1330, 7
      %v1332 = vsub.s32 %v1329, %v1331
      %v1333 = vrot.slane %v796, %v1332
      %v1335 = vunpack.c.l.s4 1985246804
      %v1336 = vunpack.c.0.s8 %v1335
      %v1337 = vlaneseq
      %v1338 = vshrl.u32 %v1337, 7
      %v1339 = vsub.s32 %v1336, %v1338
      %v1340 = vrot.slane %v796, %v1339
      %v1342 = vunpack.c.l.s4 839922192
      %v1343 = vunpack.c.0.s8 %v1342
      %v1344 = vlaneseq
      %v1345 = vshrl.u32 %v1344, 7
      %v1346 = vsub.s32 %v1343, %v1345
      %v1347 = vrot.slane %v797, %v1346
      %v1349 = vunpack.c.l.s4 1985246804
      %v1350 = vunpack.c.0.s8 %v1349
      %v1351 = vlaneseq
      %v1352 = vshrl.u32 %v1351, 7
      %v1353 = vsub.s32 %v1350, %v1352
      %v1354 = vrot.slane %v797, %v1353
      %v1356 = vunpack.c.l.s4 839922192
      %v1357 = vunpack.c.0.s8 %v1356
      %v1358 = vlaneseq
      %v1359 = vshrl.u32 %v1358, 7
      %v1360 = vsub.s32 %v1357, %v1359
      %v1361 = vrot.slane %v798, %v1360
      %v1363 = vunpack.c.l.s4 1985246804
      %v1364 = vunpack.c.0.s8 %v1363
      %v1365 = vlaneseq
      %v1366 = vshrl.u32 %v1365, 7
      %v1367 = vsub.s32 %v1364, %v1366
      %v1368 = vrot.slane %v798, %v1367
      %v1370 = vunpack.c.l.s4 839922192
      %v1371 = vunpack.c.0.s8 %v1370
      %v1372 = vlaneseq
      %v1373 = vshrl.u32 %v1372, 7
      %v1374 = vsub.s32 %v1371, %v1373
      %v1375 = vrot.slane %v799, %v1374
      %v1377 = vunpack.c.l.s4 1985246804
      %v1378 = vunpack.c.0.s8 %v1377
      %v1379 = vlaneseq
      %v1380 = vshrl.u32 %v1379, 7
      %v1381 = vsub.s32 %v1378, %v1380
      %v1382 = vrot.slane %v799, %v1381
      %v1384 = vunpack.c.l.s4 839922192
      %v1385 = vunpack.c.0.s8 %v1384
      %v1386 = vlaneseq
      %v1387 = vshrl.u32 %v1386, 7
      %v1388 = vsub.s32 %v1385, %v1387
      %v1389 = vrot.slane %v800, %v1388
      %v1391 = vunpack.c.l.s4 1985246804
      %v1392 = vunpack.c.0.s8 %v1391
      %v1393 = vlaneseq
      %v1394 = vshrl.u32 %v1393, 7
      %v1395 = vsub.s32 %v1392, %v1394
      %v1396 = vrot.slane %v800, %v1395
      %v1398 = vunpack.c.l.s4 839922192
      %v1399 = vunpack.c.0.s8 %v1398
      %v1400 = vlaneseq
      %v1401 = vshrl.u32 %v1400, 7
      %v1402 = vsub.s32 %v1399, %v1401
      %v1403 = vrot.slane %v801, %v1402
      %v1405 = vunpack.c.l.s4 1985246804
      %v1406 = vunpack.c.0.s8 %v1405
      %v1407 = vlaneseq
      %v1408 = vshrl.u32 %v1407, 7
      %v1409 = vsub.s32 %v1406, %v1408
      %v1410 = vrot.slane %v801, %v1409
      %v1412 = vunpack.c.l.s4 839922192
      %v1413 = vunpack.c.0.s8 %v1412
      %v1414 = vlaneseq
      %v1415 = vshrl.u32 %v1414, 7
      %v1416 = vsub.s32 %v1413, %v1415
      %v1417 = vrot.slane %v802, %v1416
      %v1419 = vunpack.c.l.s4 1985246804
      %v1420 = vunpack.c.0.s8 %v1419
      %v1421 = vlaneseq
      %v1422 = vshrl.u32 %v1421, 7
      %v1423 = vsub.s32 %v1420, %v1422
      %v1424 = vrot.slane %v802, %v1423
      %v1426 = vunpack.c.l.s4 839922192
      %v1427 = vunpack.c.0.s8 %v1426
      %v1428 = vlaneseq
      %v1429 = vshrl.u32 %v1428, 7
      %v1430 = vsub.s32 %v1427, %v1429
      %v1431 = vrot.slane %v803, %v1430
      %v1433 = vunpack.c.l.s4 1985246804
      %v1434 = vunpack.c.0.s8 %v1433
      %v1435 = vlaneseq
      %v1436 = vshrl.u32 %v1435, 7
      %v1437 = vsub.s32 %v1434, %v1436
      %v1438 = vrot.slane %v803, %v1437
      %v1440 = vunpack.c.l.s4 839922192
      %v1441 = vunpack.c.0.s8 %v1440
      %v1442 = vlaneseq
      %v1443 = vshrl.u32 %v1442, 7
      %v1444 = vsub.s32 %v1441, %v1443
      %v1445 = vrot.slane %v804, %v1444
      %v1447 = vunpack.c.l.s4 1985246804
      %v1448 = vunpack.c.0.s8 %v1447
      %v1449 = vlaneseq
      %v1450 = vshrl.u32 %v1449, 7
      %v1451 = vsub.s32 %v1448, %v1450
      %v1452 = vrot.slane %v804, %v1451
      %v1454 = vunpack.c.l.s4 839922192
      %v1455 = vunpack.c.0.s8 %v1454
      %v1456 = vlaneseq
      %v1457 = vshrl.u32 %v1456, 7
      %v1458 = vsub.s32 %v1455, %v1457
      %v1459 = vrot.slane %v805, %v1458
      %v1461 = vunpack.c.l.s4 1985246804
      %v1462 = vunpack.c.0.s8 %v1461
      %v1463 = vlaneseq
      %v1464 = vshrl.u32 %v1463, 7
      %v1465 = vsub.s32 %v1462, %v1464
      %v1466 = vrot.slane %v805, %v1465
      %v1468 = vunpack.c.l.s4 839922192
      %v1469 = vunpack.c.0.s8 %v1468
      %v1470 = vlaneseq
      %v1471 = vshrl.u32 %v1470, 7
      %v1472 = vsub.s32 %v1469, %v1471
      %v1473 = vrot.slane %v806, %v1472
      %v1475 = vunpack.c.l.s4 1985246804
      %v1476 = vunpack.c.0.s8 %v1475
      %v1477 = vlaneseq
      %v1478 = vshrl.u32 %v1477, 7
      %v1479 = vsub.s32 %v1476, %v1478
      %v1480 = vrot.slane %v806, %v1479
      %v1482 = vunpack.c.l.s4 839922192
      %v1483 = vunpack.c.0.s8 %v1482
      %v1484 = vlaneseq
      %v1485 = vshrl.u32 %v1484, 7
      %v1486 = vsub.s32 %v1483, %v1485
      %v1487 = vrot.slane %v807, %v1486
      %v1489 = vunpack.c.l.s4 1985246804
      %v1490 = vunpack.c.0.s8 %v1489
      %v1491 = vlaneseq
      %v1492 = vshrl.u32 %v1491, 7
      %v1493 = vsub.s32 %v1490, %v1492
      %v1494 = vrot.slane %v807, %v1493
      %v1496 = vunpack.c.l.s4 839922192
      %v1497 = vunpack.c.0.s8 %v1496
      %v1498 = vlaneseq
      %v1499 = vshrl.u32 %v1498, 7
      %v1500 = vsub.s32 %v1497, %v1499
      %v1501 = vrot.slane %v808, %v1500
      %v1503 = vunpack.c.l.s4 1985246804
      %v1504 = vunpack.c.0.s8 %v1503
      %v1505 = vlaneseq
      %v1506 = vshrl.u32 %v1505, 7
      %v1507 = vsub.s32 %v1504, %v1506
      %v1508 = vrot.slane %v808, %v1507
      %v1510 = vunpack.c.l.s4 839922192
      %v1511 = vunpack.c.0.s8 %v1510
      %v1512 = vlaneseq
      %v1513 = vshrl.u32 %v1512, 7
      %v1514 = vsub.s32 %v1511, %v1513
      %v1515 = vrot.slane %v809, %v1514
      %v1517 = vunpack.c.l.s4 1985246804
      %v1518 = vunpack.c.0.s8 %v1517
      %v1519 = vlaneseq
      %v1520 = vshrl.u32 %v1519, 7
      %v1521 = vsub.s32 %v1518, %v1520
      %v1522 = vrot.slane %v809, %v1521
      %v1524 = vunpack.c.l.s4 839922192
      %v1525 = vunpack.c.0.s8 %v1524
      %v1526 = vlaneseq
      %v1527 = vshrl.u32 %v1526, 7
      %v1528 = vsub.s32 %v1525, %v1527
      %v1529 = vrot.slane %v810, %v1528
      %v1531 = vunpack.c.l.s4 1985246804
      %v1532 = vunpack.c.0.s8 %v1531
      %v1533 = vlaneseq
      %v1534 = vshrl.u32 %v1533, 7
      %v1535 = vsub.s32 %v1532, %v1534
      %v1536 = vrot.slane %v810, %v1535
      %v1538 = vunpack.c.l.s4 839922192
      %v1539 = vunpack.c.0.s8 %v1538
      %v1540 = vlaneseq
      %v1541 = vshrl.u32 %v1540, 7
      %v1542 = vsub.s32 %v1539, %v1541
      %v1543 = vrot.slane %v811, %v1542
      %v1545 = vunpack.c.l.s4 1985246804
      %v1546 = vunpack.c.0.s8 %v1545
      %v1547 = vlaneseq
      %v1548 = vshrl.u32 %v1547, 7
      %v1549 = vsub.s32 %v1546, %v1548
      %v1550 = vrot.slane %v811, %v1549
      %v1552 = vunpack.c.l.s4 839922192
      %v1553 = vunpack.c.0.s8 %v1552
      %v1554 = vlaneseq
      %v1555 = vshrl.u32 %v1554, 7
      %v1556 = vsub.s32 %v1553, %v1555
      %v1557 = vrot.slane %v812, %v1556
      %v1559 = vunpack.c.l.s4 1985246804
      %v1560 = vunpack.c.0.s8 %v1559
      %v1561 = vlaneseq
      %v1562 = vshrl.u32 %v1561, 7
      %v1563 = vsub.s32 %v1560, %v1562
      %v1564 = vrot.slane %v812, %v1563
      %v1566 = vunpack.c.l.s4 839922192
      %v1567 = vunpack.c.0.s8 %v1566
      %v1568 = vlaneseq
      %v1569 = vshrl.u32 %v1568, 7
      %v1570 = vsub.s32 %v1567, %v1569
      %v1571 = vrot.slane %v813, %v1570
      %v1573 = vunpack.c.l.s4 1985246804
      %v1574 = vunpack.c.0.s8 %v1573
      %v1575 = vlaneseq
      %v1576 = vshrl.u32 %v1575, 7
      %v1577 = vsub.s32 %v1574, %v1576
      %v1578 = vrot.slane %v813, %v1577
      %v1580 = vunpack.c.l.s4 839922192
      %v1581 = vunpack.c.0.s8 %v1580
      %v1582 = vlaneseq
      %v1583 = vshrl.u32 %v1582, 7
      %v1584 = vsub.s32 %v1581, %v1583
      %v1585 = vrot.slane %v814, %v1584
      %v1587 = vunpack.c.l.s4 1985246804
      %v1588 = vunpack.c.0.s8 %v1587
      %v1589 = vlaneseq
      %v1590 = vshrl.u32 %v1589, 7
      %v1591 = vsub.s32 %v1588, %v1590
      %v1592 = vrot.slane %v814, %v1591
      %v1594 = vunpack.c.l.s4 839922192
      %v1595 = vunpack.c.0.s8 %v1594
      %v1596 = vlaneseq
      %v1597 = vshrl.u32 %v1596, 7
      %v1598 = vsub.s32 %v1595, %v1597
      %v1599 = vrot.slane %v815, %v1598
      %v1601 = vunpack.c.l.s4 1985246804
      %v1602 = vunpack.c.0.s8 %v1601
      %v1603 = vlaneseq
      %v1604 = vshrl.u32 %v1603, 7
      %v1605 = vsub.s32 %v1602, %v1604
      %v1606 = vrot.slane %v815, %v1605
      %v1608 = vunpack.c.l.s4 839922192
      %v1609 = vunpack.c.0.s8 %v1608
      %v1610 = vlaneseq
      %v1611 = vshrl.u32 %v1610, 7
      %v1612 = vsub.s32 %v1609, %v1611
      %v1613 = vrot.slane %v816, %v1612
      %v1615 = vunpack.c.l.s4 1985246804
      %v1616 = vunpack.c.0.s8 %v1615
      %v1617 = vlaneseq
      %v1618 = vshrl.u32 %v1617, 7
      %v1619 = vsub.s32 %v1616, %v1618
      %v1620 = vrot.slane %v816, %v1619
      %v1622 = vunpack.c.l.s4 839922192
      %v1623 = vunpack.c.0.s8 %v1622
      %v1624 = vlaneseq
      %v1625 = vshrl.u32 %v1624, 7
      %v1626 = vsub.s32 %v1623, %v1625
      %v1627 = vrot.slane %v817, %v1626
      %v1629 = vunpack.c.l.s4 1985246804
      %v1630 = vunpack.c.0.s8 %v1629
      %v1631 = vlaneseq
      %v1632 = vshrl.u32 %v1631, 7
      %v1633 = vsub.s32 %v1630, %v1632
      %v1634 = vrot.slane %v817, %v1633
      %v1636 = vunpack.c.l.s4 839922192
      %v1637 = vunpack.c.0.s8 %v1636
      %v1638 = vlaneseq
      %v1639 = vshrl.u32 %v1638, 7
      %v1640 = vsub.s32 %v1637, %v1639
      %v1641 = vrot.slane %v818, %v1640
      %v1643 = vunpack.c.l.s4 1985246804
      %v1644 = vunpack.c.0.s8 %v1643
      %v1645 = vlaneseq
      %v1646 = vshrl.u32 %v1645, 7
      %v1647 = vsub.s32 %v1644, %v1646
      %v1648 = vrot.slane %v818, %v1647
      %v1650 = vunpack.c.l.s4 839922192
      %v1651 = vunpack.c.0.s8 %v1650
      %v1652 = vlaneseq
      %v1653 = vshrl.u32 %v1652, 7
      %v1654 = vsub.s32 %v1651, %v1653
      %v1655 = vrot.slane %v819, %v1654
      %v1657 = vunpack.c.l.s4 1985246804
      %v1658 = vunpack.c.0.s8 %v1657
      %v1659 = vlaneseq
      %v1660 = vshrl.u32 %v1659, 7
      %v1661 = vsub.s32 %v1658, %v1660
      %v1662 = vrot.slane %v819, %v1661
      %v1664 = vunpack.c.l.s4 839922192
      %v1665 = vunpack.c.0.s8 %v1664
      %v1666 = vlaneseq
      %v1667 = vshrl.u32 %v1666, 7
      %v1668 = vsub.s32 %v1665, %v1667
      %v1669 = vrot.slane %v820, %v1668
      %v1671 = vunpack.c.l.s4 1985246804
      %v1672 = vunpack.c.0.s8 %v1671
      %v1673 = vlaneseq
      %v1674 = vshrl.u32 %v1673, 7
      %v1675 = vsub.s32 %v1672, %v1674
      %v1676 = vrot.slane %v820, %v1675
      %v1678 = vunpack.c.l.s4 839922192
      %v1679 = vunpack.c.0.s8 %v1678
      %v1680 = vlaneseq
      %v1681 = vshrl.u32 %v1680, 7
      %v1682 = vsub.s32 %v1679, %v1681
      %v1683 = vrot.slane %v821, %v1682
      %v1685 = vunpack.c.l.s4 1985246804
      %v1686 = vunpack.c.0.s8 %v1685
      %v1687 = vlaneseq
      %v1688 = vshrl.u32 %v1687, 7
      %v1689 = vsub.s32 %v1686, %v1688
      %v1690 = vrot.slane %v821, %v1689
      %v1692 = vunpack.c.l.s4 839922192
      %v1693 = vunpack.c.0.s8 %v1692
      %v1694 = vlaneseq
      %v1695 = vshrl.u32 %v1694, 7
      %v1696 = vsub.s32 %v1693, %v1695
      %v1697 = vrot.slane %v822, %v1696
      %v1699 = vunpack.c.l.s4 1985246804
      %v1700 = vunpack.c.0.s8 %v1699
      %v1701 = vlaneseq
      %v1702 = vshrl.u32 %v1701, 7
      %v1703 = vsub.s32 %v1700, %v1702
      %v1704 = vrot.slane %v822, %v1703
      %v1706 = vunpack.c.l.s4 839922192
      %v1707 = vunpack.c.0.s8 %v1706
      %v1708 = vlaneseq
      %v1709 = vshrl.u32 %v1708, 7
      %v1710 = vsub.s32 %v1707, %v1709
      %v1711 = vrot.slane %v823, %v1710
      %v1713 = vunpack.c.l.s4 1985246804
      %v1714 = vunpack.c.0.s8 %v1713
      %v1715 = vlaneseq
      %v1716 = vshrl.u32 %v1715, 7
      %v1717 = vsub.s32 %v1714, %v1716
      %v1718 = vrot.slane %v823, %v1717
      %v1720 = vunpack.c.l.s4 839922192
      %v1721 = vunpack.c.0.s8 %v1720
      %v1722 = vlaneseq
      %v1723 = vshrl.u32 %v1722, 7
      %v1724 = vsub.s32 %v1721, %v1723
      %v1725 = vrot.slane %v824, %v1724
      %v1727 = vunpack.c.l.s4 1985246804
      %v1728 = vunpack.c.0.s8 %v1727
      %v1729 = vlaneseq
      %v1730 = vshrl.u32 %v1729, 7
      %v1731 = vsub.s32 %v1728, %v1730
      %v1732 = vrot.slane %v824, %v1731
      %v1734 = vunpack.c.l.s4 839922192
      %v1735 = vunpack.c.0.s8 %v1734
      %v1736 = vlaneseq
      %v1737 = vshrl.u32 %v1736, 7
      %v1738 = vsub.s32 %v1735, %v1737
      %v1739 = vrot.slane %v825, %v1738
      %v1741 = vunpack.c.l.s4 1985246804
      %v1742 = vunpack.c.0.s8 %v1741
      %v1743 = vlaneseq
      %v1744 = vshrl.u32 %v1743, 7
      %v1745 = vsub.s32 %v1742, %v1744
      %v1746 = vrot.slane %v825, %v1745
      %v1748 = vunpack.c.l.s4 839922192
      %v1749 = vunpack.c.0.s8 %v1748
      %v1750 = vlaneseq
      %v1751 = vshrl.u32 %v1750, 7
      %v1752 = vsub.s32 %v1749, %v1751
      %v1753 = vrot.slane %v826, %v1752
      %v1755 = vunpack.c.l.s4 1985246804
      %v1756 = vunpack.c.0.s8 %v1755
      %v1757 = vlaneseq
      %v1758 = vshrl.u32 %v1757, 7
      %v1759 = vsub.s32 %v1756, %v1758
      %v1760 = vrot.slane %v826, %v1759
      %v1762 = vunpack.c.l.s4 839922192
      %v1763 = vunpack.c.0.s8 %v1762
      %v1764 = vlaneseq
      %v1765 = vshrl.u32 %v1764, 7
      %v1766 = vsub.s32 %v1763, %v1765
      %v1767 = vrot.slane %v827, %v1766
      %v1769 = vunpack.c.l.s4 1985246804
      %v1770 = vunpack.c.0.s8 %v1769
      %v1771 = vlaneseq
      %v1772 = vshrl.u32 %v1771, 7
      %v1773 = vsub.s32 %v1770, %v1772
      %v1774 = vrot.slane %v827, %v1773
      %v1776 = vunpack.c.l.s4 839922192
      %v1777 = vunpack.c.0.s8 %v1776
      %v1778 = vlaneseq
      %v1779 = vshrl.u32 %v1778, 7
      %v1780 = vsub.s32 %v1777, %v1779
      %v1781 = vrot.slane %v828, %v1780
      %v1783 = vunpack.c.l.s4 1985246804
      %v1784 = vunpack.c.0.s8 %v1783
      %v1785 = vlaneseq
      %v1786 = vshrl.u32 %v1785, 7
      %v1787 = vsub.s32 %v1784, %v1786
      %v1788 = vrot.slane %v828, %v1787
      %v1789 = vunpack.c.l.b16 %v899
      %v1790 = vunpack.c.l.b16 %v906
      %v1791 = vunpack.c.l.b16 %v913
      %v1792 = vunpack.c.l.b16 %v920
      %v1793 = vunpack.c.l.b16 %v927
      %v1794 = vunpack.c.l.b16 %v934
      %v1795 = vunpack.c.l.b16 %v941
      %v1796 = vunpack.c.l.b16 %v948
      %v1797 = vunpack.c.l.b16 %v955
      %v1798 = vunpack.c.l.b16 %v962
      %v1799 = vunpack.c.l.b16 %v969
      %v1800 = vunpack.c.l.b16 %v976
      %v1801 = vunpack.c.l.b16 %v983
      %v1802 = vunpack.c.l.b16 %v990
      %v1803 = vunpack.c.l.b16 %v997
      %v1804 = vunpack.c.l.b16 %v1004
      %v1805 = vunpack.c.l.b16 %v1011
      %v1806 = vunpack.c.l.b16 %v1018
      %v1807 = vunpack.c.l.b16 %v1025
      %v1808 = vunpack.c.l.b16 %v1032
      %v1809 = vunpack.c.l.b16 %v1039
      %v1810 = vunpack.c.l.b16 %v1046
      %v1811 = vunpack.c.l.b16 %v1053
      %v1812 = vunpack.c.l.b16 %v1060
      %v1813 = vunpack.c.l.b16 %v1067
      %v1814 = vunpack.c.l.b16 %v1074
      %v1815 = vunpack.c.l.b16 %v1081
      %v1816 = vunpack.c.l.b16 %v1088
      %v1817 = vunpack.c.l.b16 %v1095
      %v1818 = vunpack.c.l.b16 %v1102
      %v1819 = vunpack.c.l.b16 %v1109
      %v1820 = vunpack.c.l.b16 %v1116
      %v1821 = vunpack.c.l.b16 %v1123
      %v1822 = vunpack.c.l.b16 %v1130
      %v1823 = vunpack.c.l.b16 %v1137
      %v1824 = vunpack.c.l.b16 %v1144
      %v1825 = vunpack.c.l.b16 %v1151
      %v1826 = vunpack.c.l.b16 %v1158
      %v1827 = vunpack.c.l.b16 %v1165
      %v1828 = vunpack.c.l.b16 %v1172
      %v1829 = vunpack.c.l.b16 %v1179
      %v1830 = vunpack.c.l.b16 %v1186
      %v1831 = vunpack.c.l.b16 %v1193
      %v1832 = vunpack.c.l.b16 %v1200
      %v1833 = vunpack.c.l.b16 %v1207
      %v1834 = vunpack.c.l.b16 %v1214
      %v1835 = vunpack.c.l.b16 %v1221
      %v1836 = vunpack.c.l.b16 %v1228
      %v1837 = vunpack.c.l.b16 %v1235
      %v1838 = vunpack.c.l.b16 %v1242
      %v1839 = vunpack.c.l.b16 %v1249
      %v1840 = vunpack.c.l.b16 %v1256
      %v1841 = vunpack.c.l.b16 %v1263
      %v1842 = vunpack.c.l.b16 %v1270
      %v1843 = vunpack.c.l.b16 %v1277
      %v1844 = vunpack.c.l.b16 %v1284
      %v1845 = vunpack.c.l.b16 %v1291
      %v1846 = vunpack.c.l.b16 %v1298
      %v1847 = vunpack.c.l.b16 %v1305
      %v1848 = vunpack.c.l.b16 %v1312
      %v1849 = vunpack.c.l.b16 %v1319
      %v1850 = vunpack.c.l.b16 %v1326
      %v1851 = vunpack.c.l.b16 %v1333
      %v1852 = vunpack.c.l.b16 %v1340
      %v1853 = vunpack.c.l.b16 %v1347
      %v1854 = vunpack.c.l.b16 %v1354
      %v1855 = vunpack.c.l.b16 %v1361
      %v1856 = vunpack.c.l.b16 %v1368
      %v1857 = vunpack.c.l.b16 %v1375
      %v1858 = vunpack.c.l.b16 %v1382
      %v1859 = vunpack.c.l.b16 %v1389
      %v1860 = vunpack.c.l.b16 %v1396
      %v1861 = vunpack.c.l.b16 %v1403
      %v1862 = vunpack.c.l.b16 %v1410
      %v1863 = vunpack.c.l.b16 %v1417
      %v1864 = vunpack.c.l.b16 %v1424
      %v1865 = vunpack.c.l.b16 %v1431
      %v1866 = vunpack.c.l.b16 %v1438
      %v1867 = vunpack.c.l.b16 %v1445
      %v1868 = vunpack.c.l.b16 %v1452
      %v1869 = vunpack.c.l.b16 %v1459
      %v1870 = vunpack.c.l.b16 %v1466
      %v1871 = vunpack.c.l.b16 %v1473
      %v1872 = vunpack.c.l.b16 %v1480
      %v1873 = vunpack.c.l.b16 %v1487
      %v1874 = vunpack.c.l.b16 %v1494
      %v1875 = vunpack.c.l.b16 %v1501
      %v1876 = vunpack.c.l.b16 %v1508
      %v1877 = vunpack.c.l.b16 %v1515
      %v1878 = vunpack.c.l.b16 %v1522
      %v1879 = vunpack.c.l.b16 %v1529
      %v1880 = vunpack.c.l.b16 %v1536
      %v1881 = vunpack.c.l.b16 %v1543
      %v1882 = vunpack.c.l.b16 %v1550
      %v1883 = vunpack.c.l.b16 %v1557
      %v1884 = vunpack.c.l.b16 %v1564
      %v1885 = vunpack.c.l.b16 %v1571
      %v1886 = vunpack.c.l.b16 %v1578
      %v1887 = vunpack.c.l.b16 %v1585
      %v1888 = vunpack.c.l.b16 %v1592
      %v1889 = vunpack.c.l.b16 %v1599
      %v1890 = vunpack.c.l.b16 %v1606
      %v1891 = vunpack.c.l.b16 %v1613
      %v1892 = vunpack.c.l.b16 %v1620
      %v1893 = vunpack.c.l.b16 %v1627
      %v1894 = vunpack.c.l.b16 %v1634
      %v1895 = vunpack.c.l.b16 %v1641
      %v1896 = vunpack.c.l.b16 %v1648
      %v1897 = vunpack.c.l.b16 %v1655
      %v1898 = vunpack.c.l.b16 %v1662
      %v1899 = vunpack.c.l.b16 %v1669
      %v1900 = vunpack.c.l.b16 %v1676
      %v1901 = vunpack.c.l.b16 %v1683
      %v1902 = vunpack.c.l.b16 %v1690
      %v1903 = vunpack.c.l.b16 %v1697
      %v1904 = vunpack.c.l.b16 %v1704
      %v1905 = vunpack.c.l.b16 %v1711
      %v1906 = vunpack.c.l.b16 %v1718
      %v1907 = vunpack.c.l.b16 %v1725
      %v1908 = vunpack.c.l.b16 %v1732
      %v1909 = vunpack.c.l.b16 %v1739
      %v1910 = vunpack.c.l.b16 %v1746
      %v1911 = vunpack.c.l.b16 %v1753
      %v1912 = vunpack.c.l.b16 %v1760
      %v1913 = vunpack.c.l.b16 %v1767
      %v1914 = vunpack.c.l.b16 %v1774
      %v1915 = vunpack.c.l.b16 %v1781
      %v1916 = vunpack.c.l.b16 %v1788
      %v1917 = vlaneseq
      %v1918 = vand.u32 %v1917, 127
      %v1919 = vlaneseq
      %v1920 = vshrl.u32 %v1919, 7
      %v1921 = vsub.s32 %v1918, %v1920
      %v1922 = vrot.slane %v1789, %v1921
      %v1923 = vadd.s32 %v1918, 4294967288
      %v1924 = vlaneseq
      %v1925 = vshrl.u32 %v1924, 7
      %v1926 = vsub.s32 %v1923, %v1925
      %v1927 = vrot.slane %v1790, %v1926
      %vm1928 = vcmask 130112
      %v1929 = vsel %vm1928, %v1927, %v1922
      %v1930 = vlaneseq
      %v1931 = vshrl.u32 %v1930, 7
      %v1932 = vsub.s32 %v1918, %v1931
      %v1933 = vrot.slane %v1791, %v1932
      %v1934 = vlaneseq
      %v1935 = vshrl.u32 %v1934, 7
      %v1936 = vsub.s32 %v1923, %v1935
      %v1937 = vrot.slane %v1792, %v1936
      %v1938 = vsel %vm1928, %v1937, %v1933
      %v1939 = vlaneseq
      %v1940 = vshrl.u32 %v1939, 7
      %v1941 = vsub.s32 %v1918, %v1940
      %v1942 = vrot.slane %v1793, %v1941
      %v1943 = vlaneseq
      %v1944 = vshrl.u32 %v1943, 7
      %v1945 = vsub.s32 %v1923, %v1944
      %v1946 = vrot.slane %v1794, %v1945
      %v1947 = vsel %vm1928, %v1946, %v1942
      %v1948 = vlaneseq
      %v1949 = vshrl.u32 %v1948, 7
      %v1950 = vsub.s32 %v1918, %v1949
      %v1951 = vrot.slane %v1795, %v1950
      %v1952 = vlaneseq
      %v1953 = vshrl.u32 %v1952, 7
      %v1954 = vsub.s32 %v1923, %v1953
      %v1955 = vrot.slane %v1796, %v1954
      %v1956 = vsel %vm1928, %v1955, %v1951
      %v1957 = vlaneseq
      %v1958 = vshrl.u32 %v1957, 7
      %v1959 = vsub.s32 %v1918, %v1958
      %v1960 = vrot.slane %v1797, %v1959
      %v1961 = vlaneseq
      %v1962 = vshrl.u32 %v1961, 7
      %v1963 = vsub.s32 %v1923, %v1962
      %v1964 = vrot.slane %v1798, %v1963
      %v1965 = vsel %vm1928, %v1964, %v1960
      %v1966 = vlaneseq
      %v1967 = vshrl.u32 %v1966, 7
      %v1968 = vsub.s32 %v1918, %v1967
      %v1969 = vrot.slane %v1799, %v1968
      %v1970 = vlaneseq
      %v1971 = vshrl.u32 %v1970, 7
      %v1972 = vsub.s32 %v1923, %v1971
      %v1973 = vrot.slane %v1800, %v1972
      %v1974 = vsel %vm1928, %v1973, %v1969
      %v1975 = vlaneseq
      %v1976 = vshrl.u32 %v1975, 7
      %v1977 = vsub.s32 %v1918, %v1976
      %v1978 = vrot.slane %v1801, %v1977
      %v1979 = vlaneseq
      %v1980 = vshrl.u32 %v1979, 7
      %v1981 = vsub.s32 %v1923, %v1980
      %v1982 = vrot.slane %v1802, %v1981
      %v1983 = vsel %vm1928, %v1982, %v1978
      %v1984 = vlaneseq
      %v1985 = vshrl.u32 %v1984, 7
      %v1986 = vsub.s32 %v1918, %v1985
      %v1987 = vrot.slane %v1803, %v1986
      %v1988 = vlaneseq
      %v1989 = vshrl.u32 %v1988, 7
      %v1990 = vsub.s32 %v1923, %v1989
      %v1991 = vrot.slane %v1804, %v1990
      %v1992 = vsel %vm1928, %v1991, %v1987
      %v1993 = vlaneseq
      %v1994 = vshrl.u32 %v1993, 7
      %v1995 = vsub.s32 %v1918, %v1994
      %v1996 = vrot.slane %v1805, %v1995
      %v1997 = vlaneseq
      %v1998 = vshrl.u32 %v1997, 7
      %v1999 = vsub.s32 %v1923, %v1998
      %v2000 = vrot.slane %v1806, %v1999
      %v2001 = vsel %vm1928, %v2000, %v1996
      %v2002 = vlaneseq
      %v2003 = vshrl.u32 %v2002, 7
      %v2004 = vsub.s32 %v1918, %v2003
      %v2005 = vrot.slane %v1807, %v2004
      %v2006 = vlaneseq
      %v2007 = vshrl.u32 %v2006, 7
      %v2008 = vsub.s32 %v1923, %v2007
      %v2009 = vrot.slane %v1808, %v2008
      %v2010 = vsel %vm1928, %v2009, %v2005
      %v2011 = vlaneseq
      %v2012 = vshrl.u32 %v2011, 7
      %v2013 = vsub.s32 %v1918, %v2012
      %v2014 = vrot.slane %v1809, %v2013
      %v2015 = vlaneseq
      %v2016 = vshrl.u32 %v2015, 7
      %v2017 = vsub.s32 %v1923, %v2016
      %v2018 = vrot.slane %v1810, %v2017
      %v2019 = vsel %vm1928, %v2018, %v2014
      %v2020 = vlaneseq
      %v2021 = vshrl.u32 %v2020, 7
      %v2022 = vsub.s32 %v1918, %v2021
      %v2023 = vrot.slane %v1811, %v2022
      %v2024 = vlaneseq
      %v2025 = vshrl.u32 %v2024, 7
      %v2026 = vsub.s32 %v1923, %v2025
      %v2027 = vrot.slane %v1812, %v2026
      %v2028 = vsel %vm1928, %v2027, %v2023
      %v2029 = vlaneseq
      %v2030 = vshrl.u32 %v2029, 7
      %v2031 = vsub.s32 %v1918, %v2030
      %v2032 = vrot.slane %v1813, %v2031
      %v2033 = vlaneseq
      %v2034 = vshrl.u32 %v2033, 7
      %v2035 = vsub.s32 %v1923, %v2034
      %v2036 = vrot.slane %v1814, %v2035
      %v2037 = vsel %vm1928, %v2036, %v2032
      %v2038 = vlaneseq
      %v2039 = vshrl.u32 %v2038, 7
      %v2040 = vsub.s32 %v1918, %v2039
      %v2041 = vrot.slane %v1815, %v2040
      %v2042 = vlaneseq
      %v2043 = vshrl.u32 %v2042, 7
      %v2044 = vsub.s32 %v1923, %v2043
      %v2045 = vrot.slane %v1816, %v2044
      %v2046 = vsel %vm1928, %v2045, %v2041
      %v2047 = vlaneseq
      %v2048 = vshrl.u32 %v2047, 7
      %v2049 = vsub.s32 %v1918, %v2048
      %v2050 = vrot.slane %v1817, %v2049
      %v2051 = vlaneseq
      %v2052 = vshrl.u32 %v2051, 7
      %v2053 = vsub.s32 %v1923, %v2052
      %v2054 = vrot.slane %v1818, %v2053
      %v2055 = vsel %vm1928, %v2054, %v2050
      %v2056 = vlaneseq
      %v2057 = vshrl.u32 %v2056, 7
      %v2058 = vsub.s32 %v1918, %v2057
      %v2059 = vrot.slane %v1819, %v2058
      %v2060 = vlaneseq
      %v2061 = vshrl.u32 %v2060, 7
      %v2062 = vsub.s32 %v1923, %v2061
      %v2063 = vrot.slane %v1820, %v2062
      %v2064 = vsel %vm1928, %v2063, %v2059
      %v2065 = vlaneseq
      %v2066 = vshrl.u32 %v2065, 7
      %v2067 = vsub.s32 %v1918, %v2066
      %v2068 = vrot.slane %v1821, %v2067
      %v2069 = vlaneseq
      %v2070 = vshrl.u32 %v2069, 7
      %v2071 = vsub.s32 %v1923, %v2070
      %v2072 = vrot.slane %v1822, %v2071
      %v2073 = vsel %vm1928, %v2072, %v2068
      %v2074 = vlaneseq
      %v2075 = vshrl.u32 %v2074, 7
      %v2076 = vsub.s32 %v1918, %v2075
      %v2077 = vrot.slane %v1823, %v2076
      %v2078 = vlaneseq
      %v2079 = vshrl.u32 %v2078, 7
      %v2080 = vsub.s32 %v1923, %v2079
      %v2081 = vrot.slane %v1824, %v2080
      %v2082 = vsel %vm1928, %v2081, %v2077
      %v2083 = vlaneseq
      %v2084 = vshrl.u32 %v2083, 7
      %v2085 = vsub.s32 %v1918, %v2084
      %v2086 = vrot.slane %v1825, %v2085
      %v2087 = vlaneseq
      %v2088 = vshrl.u32 %v2087, 7
      %v2089 = vsub.s32 %v1923, %v2088
      %v2090 = vrot.slane %v1826, %v2089
      %v2091 = vsel %vm1928, %v2090, %v2086
      %v2092 = vlaneseq
      %v2093 = vshrl.u32 %v2092, 7
      %v2094 = vsub.s32 %v1918, %v2093
      %v2095 = vrot.slane %v1827, %v2094
      %v2096 = vlaneseq
      %v2097 = vshrl.u32 %v2096, 7
      %v2098 = vsub.s32 %v1923, %v2097
      %v2099 = vrot.slane %v1828, %v2098
      %v2100 = vsel %vm1928, %v2099, %v2095
      %v2101 = vlaneseq
      %v2102 = vshrl.u32 %v2101, 7
      %v2103 = vsub.s32 %v1918, %v2102
      %v2104 = vrot.slane %v1829, %v2103
      %v2105 = vlaneseq
      %v2106 = vshrl.u32 %v2105, 7
      %v2107 = vsub.s32 %v1923, %v2106
      %v2108 = vrot.slane %v1830, %v2107
      %v2109 = vsel %vm1928, %v2108, %v2104
      %v2110 = vlaneseq
      %v2111 = vshrl.u32 %v2110, 7
      %v2112 = vsub.s32 %v1918, %v2111
      %v2113 = vrot.slane %v1831, %v2112
      %v2114 = vlaneseq
      %v2115 = vshrl.u32 %v2114, 7
      %v2116 = vsub.s32 %v1923, %v2115
      %v2117 = vrot.slane %v1832, %v2116
      %v2118 = vsel %vm1928, %v2117, %v2113
      %v2119 = vlaneseq
      %v2120 = vshrl.u32 %v2119, 7
      %v2121 = vsub.s32 %v1918, %v2120
      %v2122 = vrot.slane %v1833, %v2121
      %v2123 = vlaneseq
      %v2124 = vshrl.u32 %v2123, 7
      %v2125 = vsub.s32 %v1923, %v2124
      %v2126 = vrot.slane %v1834, %v2125
      %v2127 = vsel %vm1928, %v2126, %v2122
      %v2128 = vlaneseq
      %v2129 = vshrl.u32 %v2128, 7
      %v2130 = vsub.s32 %v1918, %v2129
      %v2131 = vrot.slane %v1835, %v2130
      %v2132 = vlaneseq
      %v2133 = vshrl.u32 %v2132, 7
      %v2134 = vsub.s32 %v1923, %v2133
      %v2135 = vrot.slane %v1836, %v2134
      %v2136 = vsel %vm1928, %v2135, %v2131
      %v2137 = vlaneseq
      %v2138 = vshrl.u32 %v2137, 7
      %v2139 = vsub.s32 %v1918, %v2138
      %v2140 = vrot.slane %v1837, %v2139
      %v2141 = vlaneseq
      %v2142 = vshrl.u32 %v2141, 7
      %v2143 = vsub.s32 %v1923, %v2142
      %v2144 = vrot.slane %v1838, %v2143
      %v2145 = vsel %vm1928, %v2144, %v2140
      %v2146 = vlaneseq
      %v2147 = vshrl.u32 %v2146, 7
      %v2148 = vsub.s32 %v1918, %v2147
      %v2149 = vrot.slane %v1839, %v2148
      %v2150 = vlaneseq
      %v2151 = vshrl.u32 %v2150, 7
      %v2152 = vsub.s32 %v1923, %v2151
      %v2153 = vrot.slane %v1840, %v2152
      %v2154 = vsel %vm1928, %v2153, %v2149
      %v2155 = vlaneseq
      %v2156 = vshrl.u32 %v2155, 7
      %v2157 = vsub.s32 %v1918, %v2156
      %v2158 = vrot.slane %v1841, %v2157
      %v2159 = vlaneseq
      %v2160 = vshrl.u32 %v2159, 7
      %v2161 = vsub.s32 %v1923, %v2160
      %v2162 = vrot.slane %v1842, %v2161
      %v2163 = vsel %vm1928, %v2162, %v2158
      %v2164 = vlaneseq
      %v2165 = vshrl.u32 %v2164, 7
      %v2166 = vsub.s32 %v1918, %v2165
      %v2167 = vrot.slane %v1843, %v2166
      %v2168 = vlaneseq
      %v2169 = vshrl.u32 %v2168, 7
      %v2170 = vsub.s32 %v1923, %v2169
      %v2171 = vrot.slane %v1844, %v2170
      %v2172 = vsel %vm1928, %v2171, %v2167
      %v2173 = vlaneseq
      %v2174 = vshrl.u32 %v2173, 7
      %v2175 = vsub.s32 %v1918, %v2174
      %v2176 = vrot.slane %v1845, %v2175
      %v2177 = vlaneseq
      %v2178 = vshrl.u32 %v2177, 7
      %v2179 = vsub.s32 %v1923, %v2178
      %v2180 = vrot.slane %v1846, %v2179
      %v2181 = vsel %vm1928, %v2180, %v2176
      %v2182 = vlaneseq
      %v2183 = vshrl.u32 %v2182, 7
      %v2184 = vsub.s32 %v1918, %v2183
      %v2185 = vrot.slane %v1847, %v2184
      %v2186 = vlaneseq
      %v2187 = vshrl.u32 %v2186, 7
      %v2188 = vsub.s32 %v1923, %v2187
      %v2189 = vrot.slane %v1848, %v2188
      %v2190 = vsel %vm1928, %v2189, %v2185
      %v2191 = vlaneseq
      %v2192 = vshrl.u32 %v2191, 7
      %v2193 = vsub.s32 %v1918, %v2192
      %v2194 = vrot.slane %v1849, %v2193
      %v2195 = vlaneseq
      %v2196 = vshrl.u32 %v2195, 7
      %v2197 = vsub.s32 %v1923, %v2196
      %v2198 = vrot.slane %v1850, %v2197
      %v2199 = vsel %vm1928, %v2198, %v2194
      %v2200 = vlaneseq
      %v2201 = vshrl.u32 %v2200, 7
      %v2202 = vsub.s32 %v1918, %v2201
      %v2203 = vrot.slane %v1851, %v2202
      %v2204 = vlaneseq
      %v2205 = vshrl.u32 %v2204, 7
      %v2206 = vsub.s32 %v1923, %v2205
      %v2207 = vrot.slane %v1852, %v2206
      %v2208 = vsel %vm1928, %v2207, %v2203
      %v2209 = vlaneseq
      %v2210 = vshrl.u32 %v2209, 7
      %v2211 = vsub.s32 %v1918, %v2210
      %v2212 = vrot.slane %v1853, %v2211
      %v2213 = vlaneseq
      %v2214 = vshrl.u32 %v2213, 7
      %v2215 = vsub.s32 %v1923, %v2214
      %v2216 = vrot.slane %v1854, %v2215
      %v2217 = vsel %vm1928, %v2216, %v2212
      %v2218 = vlaneseq
      %v2219 = vshrl.u32 %v2218, 7
      %v2220 = vsub.s32 %v1918, %v2219
      %v2221 = vrot.slane %v1855, %v2220
      %v2222 = vlaneseq
      %v2223 = vshrl.u32 %v2222, 7
      %v2224 = vsub.s32 %v1923, %v2223
      %v2225 = vrot.slane %v1856, %v2224
      %v2226 = vsel %vm1928, %v2225, %v2221
      %v2227 = vlaneseq
      %v2228 = vshrl.u32 %v2227, 7
      %v2229 = vsub.s32 %v1918, %v2228
      %v2230 = vrot.slane %v1857, %v2229
      %v2231 = vlaneseq
      %v2232 = vshrl.u32 %v2231, 7
      %v2233 = vsub.s32 %v1923, %v2232
      %v2234 = vrot.slane %v1858, %v2233
      %v2235 = vsel %vm1928, %v2234, %v2230
      %v2236 = vlaneseq
      %v2237 = vshrl.u32 %v2236, 7
      %v2238 = vsub.s32 %v1918, %v2237
      %v2239 = vrot.slane %v1859, %v2238
      %v2240 = vlaneseq
      %v2241 = vshrl.u32 %v2240, 7
      %v2242 = vsub.s32 %v1923, %v2241
      %v2243 = vrot.slane %v1860, %v2242
      %v2244 = vsel %vm1928, %v2243, %v2239
      %v2245 = vlaneseq
      %v2246 = vshrl.u32 %v2245, 7
      %v2247 = vsub.s32 %v1918, %v2246
      %v2248 = vrot.slane %v1861, %v2247
      %v2249 = vlaneseq
      %v2250 = vshrl.u32 %v2249, 7
      %v2251 = vsub.s32 %v1923, %v2250
      %v2252 = vrot.slane %v1862, %v2251
      %v2253 = vsel %vm1928, %v2252, %v2248
      %v2254 = vlaneseq
      %v2255 = vshrl.u32 %v2254, 7
      %v2256 = vsub.s32 %v1918, %v2255
      %v2257 = vrot.slane %v1863, %v2256
      %v2258 = vlaneseq
      %v2259 = vshrl.u32 %v2258, 7
      %v2260 = vsub.s32 %v1923, %v2259
      %v2261 = vrot.slane %v1864, %v2260
      %v2262 = vsel %vm1928, %v2261, %v2257
      %v2263 = vlaneseq
      %v2264 = vshrl.u32 %v2263, 7
      %v2265 = vsub.s32 %v1918, %v2264
      %v2266 = vrot.slane %v1865, %v2265
      %v2267 = vlaneseq
      %v2268 = vshrl.u32 %v2267, 7
      %v2269 = vsub.s32 %v1923, %v2268
      %v2270 = vrot.slane %v1866, %v2269
      %v2271 = vsel %vm1928, %v2270, %v2266
      %v2272 = vlaneseq
      %v2273 = vshrl.u32 %v2272, 7
      %v2274 = vsub.s32 %v1918, %v2273
      %v2275 = vrot.slane %v1867, %v2274
      %v2276 = vlaneseq
      %v2277 = vshrl.u32 %v2276, 7
      %v2278 = vsub.s32 %v1923, %v2277
      %v2279 = vrot.slane %v1868, %v2278
      %v2280 = vsel %vm1928, %v2279, %v2275
      %v2281 = vlaneseq
      %v2282 = vshrl.u32 %v2281, 7
      %v2283 = vsub.s32 %v1918, %v2282
      %v2284 = vrot.slane %v1869, %v2283
      %v2285 = vlaneseq
      %v2286 = vshrl.u32 %v2285, 7
      %v2287 = vsub.s32 %v1923, %v2286
      %v2288 = vrot.slane %v1870, %v2287
      %v2289 = vsel %vm1928, %v2288, %v2284
      %v2290 = vlaneseq
      %v2291 = vshrl.u32 %v2290, 7
      %v2292 = vsub.s32 %v1918, %v2291
      %v2293 = vrot.slane %v1871, %v2292
      %v2294 = vlaneseq
      %v2295 = vshrl.u32 %v2294, 7
      %v2296 = vsub.s32 %v1923, %v2295
      %v2297 = vrot.slane %v1872, %v2296
      %v2298 = vsel %vm1928, %v2297, %v2293
      %v2299 = vlaneseq
      %v2300 = vshrl.u32 %v2299, 7
      %v2301 = vsub.s32 %v1918, %v2300
      %v2302 = vrot.slane %v1873, %v2301
      %v2303 = vlaneseq
      %v2304 = vshrl.u32 %v2303, 7
      %v2305 = vsub.s32 %v1923, %v2304
      %v2306 = vrot.slane %v1874, %v2305
      %v2307 = vsel %vm1928, %v2306, %v2302
      %v2308 = vlaneseq
      %v2309 = vshrl.u32 %v2308, 7
      %v2310 = vsub.s32 %v1918, %v2309
      %v2311 = vrot.slane %v1875, %v2310
      %v2312 = vlaneseq
      %v2313 = vshrl.u32 %v2312, 7
      %v2314 = vsub.s32 %v1923, %v2313
      %v2315 = vrot.slane %v1876, %v2314
      %v2316 = vsel %vm1928, %v2315, %v2311
      %v2317 = vlaneseq
      %v2318 = vshrl.u32 %v2317, 7
      %v2319 = vsub.s32 %v1918, %v2318
      %v2320 = vrot.slane %v1877, %v2319
      %v2321 = vlaneseq
      %v2322 = vshrl.u32 %v2321, 7
      %v2323 = vsub.s32 %v1923, %v2322
      %v2324 = vrot.slane %v1878, %v2323
      %v2325 = vsel %vm1928, %v2324, %v2320
      %v2326 = vlaneseq
      %v2327 = vshrl.u32 %v2326, 7
      %v2328 = vsub.s32 %v1918, %v2327
      %v2329 = vrot.slane %v1879, %v2328
      %v2330 = vlaneseq
      %v2331 = vshrl.u32 %v2330, 7
      %v2332 = vsub.s32 %v1923, %v2331
      %v2333 = vrot.slane %v1880, %v2332
      %v2334 = vsel %vm1928, %v2333, %v2329
      %v2335 = vlaneseq
      %v2336 = vshrl.u32 %v2335, 7
      %v2337 = vsub.s32 %v1918, %v2336
      %v2338 = vrot.slane %v1881, %v2337
      %v2339 = vlaneseq
      %v2340 = vshrl.u32 %v2339, 7
      %v2341 = vsub.s32 %v1923, %v2340
      %v2342 = vrot.slane %v1882, %v2341
      %v2343 = vsel %vm1928, %v2342, %v2338
      %v2344 = vlaneseq
      %v2345 = vshrl.u32 %v2344, 7
      %v2346 = vsub.s32 %v1918, %v2345
      %v2347 = vrot.slane %v1883, %v2346
      %v2348 = vlaneseq
      %v2349 = vshrl.u32 %v2348, 7
      %v2350 = vsub.s32 %v1923, %v2349
      %v2351 = vrot.slane %v1884, %v2350
      %v2352 = vsel %vm1928, %v2351, %v2347
      %v2353 = vlaneseq
      %v2354 = vshrl.u32 %v2353, 7
      %v2355 = vsub.s32 %v1918, %v2354
      %v2356 = vrot.slane %v1885, %v2355
      %v2357 = vlaneseq
      %v2358 = vshrl.u32 %v2357, 7
      %v2359 = vsub.s32 %v1923, %v2358
      %v2360 = vrot.slane %v1886, %v2359
      %v2361 = vsel %vm1928, %v2360, %v2356
      %v2362 = vlaneseq
      %v2363 = vshrl.u32 %v2362, 7
      %v2364 = vsub.s32 %v1918, %v2363
      %v2365 = vrot.slane %v1887, %v2364
      %v2366 = vlaneseq
      %v2367 = vshrl.u32 %v2366, 7
      %v2368 = vsub.s32 %v1923, %v2367
      %v2369 = vrot.slane %v1888, %v2368
      %v2370 = vsel %vm1928, %v2369, %v2365
      %v2371 = vlaneseq
      %v2372 = vshrl.u32 %v2371, 7
      %v2373 = vsub.s32 %v1918, %v2372
      %v2374 = vrot.slane %v1889, %v2373
      %v2375 = vlaneseq
      %v2376 = vshrl.u32 %v2375, 7
      %v2377 = vsub.s32 %v1923, %v2376
      %v2378 = vrot.slane %v1890, %v2377
      %v2379 = vsel %vm1928, %v2378, %v2374
      %v2380 = vlaneseq
      %v2381 = vshrl.u32 %v2380, 7
      %v2382 = vsub.s32 %v1918, %v2381
      %v2383 = vrot.slane %v1891, %v2382
      %v2384 = vlaneseq
      %v2385 = vshrl.u32 %v2384, 7
      %v2386 = vsub.s32 %v1923, %v2385
      %v2387 = vrot.slane %v1892, %v2386
      %v2388 = vsel %vm1928, %v2387, %v2383
      %v2389 = vlaneseq
      %v2390 = vshrl.u32 %v2389, 7
      %v2391 = vsub.s32 %v1918, %v2390
      %v2392 = vrot.slane %v1893, %v2391
      %v2393 = vlaneseq
      %v2394 = vshrl.u32 %v2393, 7
      %v2395 = vsub.s32 %v1923, %v2394
      %v2396 = vrot.slane %v1894, %v2395
      %v2397 = vsel %vm1928, %v2396, %v2392
      %v2398 = vlaneseq
      %v2399 = vshrl.u32 %v2398, 7
      %v2400 = vsub.s32 %v1918, %v2399
      %v2401 = vrot.slane %v1895, %v2400
      %v2402 = vlaneseq
      %v2403 = vshrl.u32 %v2402, 7
      %v2404 = vsub.s32 %v1923, %v2403
      %v2405 = vrot.slane %v1896, %v2404
      %v2406 = vsel %vm1928, %v2405, %v2401
      %v2407 = vlaneseq
      %v2408 = vshrl.u32 %v2407, 7
      %v2409 = vsub.s32 %v1918, %v2408
      %v2410 = vrot.slane %v1897, %v2409
      %v2411 = vlaneseq
      %v2412 = vshrl.u32 %v2411, 7
      %v2413 = vsub.s32 %v1923, %v2412
      %v2414 = vrot.slane %v1898, %v2413
      %v2415 = vsel %vm1928, %v2414, %v2410
      %v2416 = vlaneseq
      %v2417 = vshrl.u32 %v2416, 7
      %v2418 = vsub.s32 %v1918, %v2417
      %v2419 = vrot.slane %v1899, %v2418
      %v2420 = vlaneseq
      %v2421 = vshrl.u32 %v2420, 7
      %v2422 = vsub.s32 %v1923, %v2421
      %v2423 = vrot.slane %v1900, %v2422
      %v2424 = vsel %vm1928, %v2423, %v2419
      %v2425 = vlaneseq
      %v2426 = vshrl.u32 %v2425, 7
      %v2427 = vsub.s32 %v1918, %v2426
      %v2428 = vrot.slane %v1901, %v2427
      %v2429 = vlaneseq
      %v2430 = vshrl.u32 %v2429, 7
      %v2431 = vsub.s32 %v1923, %v2430
      %v2432 = vrot.slane %v1902, %v2431
      %v2433 = vsel %vm1928, %v2432, %v2428
      %v2434 = vlaneseq
      %v2435 = vshrl.u32 %v2434, 7
      %v2436 = vsub.s32 %v1918, %v2435
      %v2437 = vrot.slane %v1903, %v2436
      %v2438 = vlaneseq
      %v2439 = vshrl.u32 %v2438, 7
      %v2440 = vsub.s32 %v1923, %v2439
      %v2441 = vrot.slane %v1904, %v2440
      %v2442 = vsel %vm1928, %v2441, %v2437
      %v2443 = vlaneseq
      %v2444 = vshrl.u32 %v2443, 7
      %v2445 = vsub.s32 %v1918, %v2444
      %v2446 = vrot.slane %v1905, %v2445
      %v2447 = vlaneseq
      %v2448 = vshrl.u32 %v2447, 7
      %v2449 = vsub.s32 %v1923, %v2448
      %v2450 = vrot.slane %v1906, %v2449
      %v2451 = vsel %vm1928, %v2450, %v2446
      %v2452 = vlaneseq
      %v2453 = vshrl.u32 %v2452, 7
      %v2454 = vsub.s32 %v1918, %v2453
      %v2455 = vrot.slane %v1907, %v2454
      %v2456 = vlaneseq
      %v2457 = vshrl.u32 %v2456, 7
      %v2458 = vsub.s32 %v1923, %v2457
      %v2459 = vrot.slane %v1908, %v2458
      %v2460 = vsel %vm1928, %v2459, %v2455
      %v2461 = vlaneseq
      %v2462 = vshrl.u32 %v2461, 7
      %v2463 = vsub.s32 %v1918, %v2462
      %v2464 = vrot.slane %v1909, %v2463
      %v2465 = vlaneseq
      %v2466 = vshrl.u32 %v2465, 7
      %v2467 = vsub.s32 %v1923, %v2466
      %v2468 = vrot.slane %v1910, %v2467
      %v2469 = vsel %vm1928, %v2468, %v2464
      %v2470 = vlaneseq
      %v2471 = vshrl.u32 %v2470, 7
      %v2472 = vsub.s32 %v1918, %v2471
      %v2473 = vrot.slane %v1911, %v2472
      %v2474 = vlaneseq
      %v2475 = vshrl.u32 %v2474, 7
      %v2476 = vsub.s32 %v1923, %v2475
      %v2477 = vrot.slane %v1912, %v2476
      %v2478 = vsel %vm1928, %v2477, %v2473
      %v2479 = vlaneseq
      %v2480 = vshrl.u32 %v2479, 7
      %v2481 = vsub.s32 %v1918, %v2480
      %v2482 = vrot.slane %v1913, %v2481
      %v2483 = vlaneseq
      %v2484 = vshrl.u32 %v2483, 7
      %v2485 = vsub.s32 %v1923, %v2484
      %v2486 = vrot.slane %v1914, %v2485
      %v2487 = vsel %vm1928, %v2486, %v2482
      %v2488 = vlaneseq
      %v2489 = vshrl.u32 %v2488, 7
      %v2490 = vsub.s32 %v1918, %v2489
      %v2491 = vrot.slane %v1915, %v2490
      %v2492 = vlaneseq
      %v2493 = vshrl.u32 %v2492, 7
      %v2494 = vsub.s32 %v1923, %v2493
      %v2495 = vrot.slane %v1916, %v2494
      %v2496 = vsel %vm1928, %v2495, %v2491
      %vm2497 = vcmask 1041409
      %v2498 = vsel %vm2497, %v1938, %v1929
      %vm2499 = vcmask 1042434
      %v2500 = vsel %vm2499, %v1947, %v2498
      %vm2501 = vcmask 1043459
      %v2502 = vsel %vm2501, %v1956, %v2500
      %vm2503 = vcmask 1044484
      %v2504 = vsel %vm2503, %v1965, %v2502
      %vm2505 = vcmask 1045509
      %v2506 = vsel %vm2505, %v1974, %v2504
      %vm2507 = vcmask 1046534
      %v2508 = vsel %vm2507, %v1983, %v2506
      %vm2509 = vcmask 1047559
      %v2510 = vsel %vm2509, %v1992, %v2508
      %v2511 = vsel %vm2497, %v2010, %v2001
      %v2512 = vsel %vm2499, %v2019, %v2511
      %v2513 = vsel %vm2501, %v2028, %v2512
      %v2514 = vsel %vm2503, %v2037, %v2513
      %v2515 = vsel %vm2505, %v2046, %v2514
      %v2516 = vsel %vm2507, %v2055, %v2515
      %v2517 = vsel %vm2509, %v2064, %v2516
      %v2518 = vsel %vm2497, %v2082, %v2073
      %v2519 = vsel %vm2499, %v2091, %v2518
      %v2520 = vsel %vm2501, %v2100, %v2519
      %v2521 = vsel %vm2503, %v2109, %v2520
      %v2522 = vsel %vm2505, %v2118, %v2521
      %v2523 = vsel %vm2507, %v2127, %v2522
      %v2524 = vsel %vm2509, %v2136, %v2523
      %v2525 = vsel %vm2497, %v2154, %v2145
      %v2526 = vsel %vm2499, %v2163, %v2525
      %v2527 = vsel %vm2501, %v2172, %v2526
      %v2528 = vsel %vm2503, %v2181, %v2527
      %v2529 = vsel %vm2505, %v2190, %v2528
      %v2530 = vsel %vm2507, %v2199, %v2529
      %v2531 = vsel %vm2509, %v2208, %v2530
      %v2532 = vsel %vm2497, %v2226, %v2217
      %v2533 = vsel %vm2499, %v2235, %v2532
      %v2534 = vsel %vm2501, %v2244, %v2533
      %v2535 = vsel %vm2503, %v2253, %v2534
      %v2536 = vsel %vm2505, %v2262, %v2535
      %v2537 = vsel %vm2507, %v2271, %v2536
      %v2538 = vsel %vm2509, %v2280, %v2537
      %v2539 = vsel %vm2497, %v2298, %v2289
      %v2540 = vsel %vm2499, %v2307, %v2539
      %v2541 = vsel %vm2501, %v2316, %v2540
      %v2542 = vsel %vm2503, %v2325, %v2541
      %v2543 = vsel %vm2505, %v2334, %v2542
      %v2544 = vsel %vm2507, %v2343, %v2543
      %v2545 = vsel %vm2509, %v2352, %v2544
      %v2546 = vsel %vm2497, %v2370, %v2361
      %v2547 = vsel %vm2499, %v2379, %v2546
      %v2548 = vsel %vm2501, %v2388, %v2547
      %v2549 = vsel %vm2503, %v2397, %v2548
      %v2550 = vsel %vm2505, %v2406, %v2549
      %v2551 = vsel %vm2507, %v2415, %v2550
      %v2552 = vsel %vm2509, %v2424, %v2551
      %v2553 = vsel %vm2497, %v2442, %v2433
      %v2554 = vsel %vm2499, %v2451, %v2553
      %v2555 = vsel %vm2501, %v2460, %v2554
      %v2556 = vsel %vm2503, %v2469, %v2555
      %v2557 = vsel %vm2505, %v2478, %v2556
      %v2558 = vsel %vm2507, %v2487, %v2557
      %v2559 = vsel %vm2509, %v2496, %v2558
      %v2560 = vpack.c.b16 %v2510, %v2510
      %v2561 = vpack.c.b16 %v2517, %v2517
      %v2562 = vpack.c.b16 %v2524, %v2524
      %v2563 = vpack.c.b16 %v2531, %v2531
      %v2564 = vpack.c.b16 %v2538, %v2538
      %v2565 = vpack.c.b16 %v2545, %v2545
      %v2566 = vpack.c.b16 %v2552, %v2552
      %v2567 = vpack.c.b16 %v2559, %v2559
      %vm2576 = vcmask 125952
      %2577 = vst.msk [vmem:[%s121] sm:$0xf] %vm2576, %v2560
      %2578 = vst.msk [vmem:[%s121 + $0x4] sm:$0xf] %vm2576, %v2561
      %2579 = vst.msk [vmem:[%s121 + $0x8] sm:$0xf] %vm2576, %v2562
      %2580 = vst.msk [vmem:[%s121 + $0xc] sm:$0xf] %vm2576, %v2563
      %2581 = vst.msk [vmem:[%s121 + $0x10] sm:$0xf] %vm2576, %v2564
      %2582 = vst.msk [vmem:[%s121 + $0x14] sm:$0xf] %vm2576, %v2565
      %2583 = vst.msk [vmem:[%s121 + $0x18] sm:$0xf] %vm2576, %v2566
      %2584 = vst.msk [vmem:[%s121 + $0x1c] sm:$0xf] %vm2576, %v2567
      %s2585 = smul.u32 8, %s12
      %p2586 = scmp.lt.s32.totalorder %s2585, 15
      %s2587 = scalar_select %p2586, %s2585, 15
      %s2588 = smul.addr %s2587, 4
      %s2589 = scalar_lea.vmem %s1, %s2588
      // Predicated region
      $region25: #{tpu_custom_call.1} parent=23 // pred_check
        %p2590 = pneg %p56
      $region26: #{tpu_custom_call.1} parent=23 // pred_check_branch
        %2592 = sbr.rel (%p2590) target = $region28
      $region27: #{tpu_custom_call.1} parent=23 // pred_region
        %s2593 = smul.u32 8, %s12
      $region28: #{tpu_custom_call.1} parent=23 // pred_fallthru
        _
    $region24: #{tpu_custom_call.1} parent=5 // pred_fallthru
      _
    %p2594 = scmp.le.s32.totalorder 2, %s7
    // Predicated region
    $region29: #{tpu_custom_call.1} parent=5 // pred_check
      %p2595 = pneg %p2594
    $region30: #{tpu_custom_call.1} parent=5 // pred_check_branch
      %2597 = sbr.rel (%p2595) target = $region32
    $region31: #{tpu_custom_call.1} parent=5 // pred_region
      %s2598 = ssub.s32 %s7, 2
      // Predicated region
      $region33: #{tpu_custom_call.1} parent=31 // pred_check
        %p2599 = pneg %p62
      $region34: #{tpu_custom_call.1} parent=31 // pred_check_branch
        %2601 = sbr.rel (%p2599) target = $region36
      $region35: #{tpu_custom_call.1} parent=31 // pred_region
        %s2602 = smul.u32 8, %s13
        %p2603 = scmp.lt.s32.totalorder %s2602, 15
        %s2604 = scalar_select %p2603, %s2602, 15
        %s2605 = smul.addr %s2604, 4
        %s2606 = scalar_lea.vmem %s1, %s2605
      $region36: #{tpu_custom_call.1} parent=31 // pred_fallthru
        _
    $region32: #{tpu_custom_call.1} parent=5 // pred_fallthru
      _
  $region6: #{tpu_custom_call.1} parent=0 // loop_footer
    %s11 = sadd.s32 1, %s7
  $region7: #{tpu_custom_call.1} parent=0 // loop_footer_branch
    %6 = sbr.rel target = $region3
  $region8: #{tpu_custom_call.1} parent=0 // loop_exit
    _

</llo_original>
